<compile_context>
chip_gen: v6e
topology: v6e:2x2x1
jax: 0.10.0
libtpu: 0.0.40
codegen_flags: <defaults>
</compile_context>

<pallas_src>
import functools
import math

import jax
import jax.numpy as jnp
from jax.experimental import pallas as pl
from jax.experimental.pallas import tpu as pltpu


_VMEM = pltpu.MemorySpace.VMEM
CLS_PAD = 128   # lane-dense classifier width; logits live in [:, :3]

CFG = dict(
    vocab=50, type_vocab=2, max_pos=16,
    hidden=32, heads=4, layers=2, intermediate=64, num_classes=3,
)


def _vmem_limit_bytes():
    """Generation-aware scoped-VMEM limit (~5/8 of physical: 40MiB v7x, 80MiB v6e)."""
    try:
        cap = int(pltpu.get_tpu_info().vmem_capacity_bytes)
    except Exception:
        cap = 64 * 1024 * 1024
    return max(16 * 1024 * 1024, min((cap * 5) // 8, 100 * 1024 * 1024))


_VMEM_LIMIT = _vmem_limit_bytes()


def _pick_tile(dim, pref, align):
    """Largest aligned tile <= pref dividing dim; full dim when dim <= pref.

    No silent fall-back to a huge full-dim block: raise if no aligned divisor
    exists (would need pl.cdiv + remainder masking when scaling further).
    """
    if dim <= pref:
        return dim
    t = (pref // align) * align
    while t >= align:
        if dim % t == 0:
            return t
        t -= align
    raise ValueError(f"no {align}-aligned tile <= {pref} divides {dim}")


# ----------------------------------------------------------------------------
# Pallas kernels
# ----------------------------------------------------------------------------

def _matmul_bias_act_kernel(x_ref, w_ref, b_ref, o_ref, acc_ref, *, act):
    """o = act(x @ w + b); grid (M, K), weight-resident in N, f32 accumulator."""
    @pl.when(pl.program_id(1) == 0)
    def _():
        acc_ref[...] = jnp.zeros_like(acc_ref)

    acc_ref[...] += jnp.dot(x_ref[...], w_ref[...],
                            preferred_element_type=jnp.float32)

    @pl.when(pl.program_id(1) == pl.num_programs(1) - 1)
    def _():
        y = acc_ref[...] + b_ref[...]
        if act == "gelu":
            # TODO(synk): HF BERT uses exact erf-GELU; tanh approx differs ~1e-3.
            y = jax.nn.gelu(y, approximate=True)
        elif act == "tanh":
            y = jnp.tanh(y)
        o_ref[...] = y.astype(o_ref.dtype)


def _attn_out_ln_kernel(qkv_ref, bias_ref, res_ref, wo_ref, bo_ref, g_ref,
                        beta_ref, o_ref, ctx_ref, *, n_heads, d_head, eps):
    """One batch row: per-head softmax(q k^T + bias) @ v -> ctx scratch, then
    LayerNorm(ctx @ Wo + bo + residual) * g + beta, all without leaving VMEM.

    The 1/sqrt(Dh) scale is already folded into the Q projection weights/bias.
    Per-head results are stored directly into lane slices of the (S, H) f32
    scratch (no Python list / jnp.concatenate -> bounded live ranges).
    """
    H = n_heads * d_head
    qkv = qkv_ref[0]           # (S, 3H)  bf16
    bias = bias_ref[0]         # (1, S)   f32, broadcast over query rows & heads
    for hh in range(n_heads):
        q = qkv[:, hh * d_head:(hh + 1) * d_head]
        k = qkv[:, H + hh * d_head:H + (hh + 1) * d_head]
        v = qkv[:, 2 * H + hh * d_head:2 * H + (hh + 1) * d_head]
        # contract the head dim directly (no k.T / XLU transpose)
        s = jax.lax.dot_general(q, k, (((1,), (1,)), ((), ())),
                                preferred_element_type=jnp.float32)
        s = s + bias
        m = jnp.max(s, axis=-1, keepdims=True)
        p = jnp.exp(s - m)
        denom = jnp.sum(p, axis=-1, keepdims=True)
        p = p * pl.reciprocal(denom, approx=True)
        ctx_ref[:, hh * d_head:(hh + 1) * d_head] = jnp.dot(
            p.astype(v.dtype), v, preferred_element_type=jnp.float32)

    # fused output projection + bias + residual + LayerNorm epilogue
    y = jnp.dot(ctx_ref[...].astype(jnp.bfloat16), wo_ref[...],
                preferred_element_type=jnp.float32)
    y = y + bo_ref[...] + res_ref[0].astype(jnp.float32)
    mean = jnp.mean(y, axis=-1, keepdims=True)
    var = jnp.mean((y - mean) ** 2, axis=-1, keepdims=True)
    yn = (y - mean) * jax.lax.rsqrt(var + eps)
    o_ref[0] = (yn * g_ref[...] + beta_ref[...]).astype(o_ref.dtype)


def _ffn_res_ln_kernel(x_ref, wi_ref, bi_ref, wf_ref, bf_ref, g_ref, beta_ref,
                       o_ref, *, eps):
    """o = LayerNorm(GELU(x@Wi+bi)@Wf + bf + x) * g + beta.

    The (tm, I) intermediate never leaves VMEM; Wi/Wf stay resident across all
    M tiles (constant index_map). x doubles as the residual.
    """
    x = x_ref[...]                                                # (tm, H) bf16
    inter = jnp.dot(x, wi_ref[...], preferred_element_type=jnp.float32)
    inter = inter + bi_ref[...]
    # TODO(synk): HF BERT uses exact erf-GELU; tanh approx differs ~1e-3.
    inter = jax.nn.gelu(inter, approximate=True)
    y = jnp.dot(inter.astype(jnp.bfloat16), wf_ref[...],
                preferred_element_type=jnp.float32)
    y = y + bf_ref[...] + x.astype(jnp.float32)
    mean = jnp.mean(y, axis=-1, keepdims=True)
    var = jnp.mean((y - mean) ** 2, axis=-1, keepdims=True)
    yn = (y - mean) * jax.lax.rsqrt(var + eps)
    o_ref[...] = (yn * g_ref[...] + beta_ref[...]).astype(o_ref.dtype)


def _layernorm_kernel(x_ref, g_ref, b_ref, o_ref, *, eps):
    """o = LayerNorm(x) * g + b over the last axis (embedding LN)."""
    x = x_ref[...].astype(jnp.float32)
    mean = jnp.mean(x, axis=-1, keepdims=True)
    var = jnp.mean((x - mean) ** 2, axis=-1, keepdims=True)
    xn = (x - mean) * jax.lax.rsqrt(var + eps)
    o_ref[...] = (xn * g_ref[...] + b_ref[...]).astype(o_ref.dtype)


def _pooler_cls_kernel(h0_ref, pw_ref, pb_ref, cw_ref, cb_ref, o_ref):
    """logits = tanh(h0 @ Wp + bp) @ Wc + bc  (Dropout(0.3) is inference identity)."""
    pooled = jnp.dot(h0_ref[...], pw_ref[...], preferred_element_type=jnp.float32)
    pooled = jnp.tanh(pooled + pb_ref[...])
    logits = jnp.dot(pooled.astype(cw_ref.dtype), cw_ref[...],
                     preferred_element_type=jnp.float32)
    o_ref[...] = (logits + cb_ref[...]).astype(o_ref.dtype)


# ----------------------------------------------------------------------------
# Wrappers calling pallas_call
# ----------------------------------------------------------------------------

def matmul_bias_act(x, w, b, act="none", out_dtype=jnp.bfloat16, tm=512, tk=512):
    """act(x @ w + b); weight-resident in N, tiled over (M, K)."""
    M, K = x.shape
    N = w.shape[1]
    tm = _pick_tile(M, tm, 8)
    tk = _pick_tile(K, tk, 128 if K >= 128 else 8)
    grid = (M // tm, K // tk)
    return pl.pallas_call(
        functools.partial(_matmul_bias_act_kernel, act=act),
        out_shape=jax.ShapeDtypeStruct((M, N), out_dtype),
        grid_spec=pltpu.PrefetchScalarGridSpec(
            num_scalar_prefetch=0, grid=grid,
            in_specs=[
                pl.BlockSpec((tm, tk), lambda i, k: (i, k)),
                pl.BlockSpec((tk, N), lambda i, k: (k, 0)),
                pl.BlockSpec((1, N), lambda i, k: (0, 0)),
            ],
            out_specs=pl.BlockSpec((tm, N), lambda i, k: (i, 0)),
            scratch_shapes=[pltpu.VMEM((tm, N), jnp.float32)]),
        compiler_params=pltpu.CompilerParams(
            dimension_semantics=("parallel", "arbitrary"),
            vmem_limit_bytes=_VMEM_LIMIT),
    )(x.astype(jnp.bfloat16), w, b.reshape(1, N))


def attention_out_ln(qkv, mask_bias, residual, wo, bo, gamma, beta,
                     n_heads, d_head, eps=1e-12):
    """Fused MHA + output projection + residual + LayerNorm.

    qkv: (B, S, 3H) bf16 fused QKV, mask_bias: (B, 1, S) f32 additive,
    residual: (B, S, H) bf16 layer input. Grid is one step per batch row.
    """
    B, S, H3 = qkv.shape
    H = n_heads * d_head
    return pl.pallas_call(
        functools.partial(_attn_out_ln_kernel, n_heads=n_heads, d_head=d_head,
                          eps=eps),
        out_shape=jax.ShapeDtypeStruct((B, S, H), jnp.bfloat16),
        grid_spec=pltpu.PrefetchScalarGridSpec(
            num_scalar_prefetch=0, grid=(B,),
            in_specs=[
                pl.BlockSpec((1, S, H3), lambda b: (b, 0, 0)),
                pl.BlockSpec((1, 1, S), lambda b: (b, 0, 0)),
                pl.BlockSpec((1, S, H), lambda b: (b, 0, 0)),
                pl.BlockSpec((H, H), lambda b: (0, 0)),
                pl.BlockSpec((1, H), lambda b: (0, 0)),
                pl.BlockSpec((1, H), lambda b: (0, 0)),
                pl.BlockSpec((1, H), lambda b: (0, 0)),
            ],
            out_specs=pl.BlockSpec((1, S, H), lambda b: (b, 0, 0)),
            scratch_shapes=[pltpu.VMEM((S, H), jnp.float32)]),
        compiler_params=pltpu.CompilerParams(
            dimension_semantics=("parallel",),
            vmem_limit_bytes=_VMEM_LIMIT),
    )(qkv, mask_bias, residual, wo, bo.reshape(1, H),
      gamma.reshape(1, H), beta.reshape(1, H))


def ffn_res_ln(x, wi, bi, wf, bf, gamma, beta, eps=1e-12,
               out_dtype=jnp.bfloat16, tm=512):
    """Fused FFN: LayerNorm(GELU(x@Wi+bi)@Wf + bf + x); intermediate stays in VMEM."""
    M, H = x.shape
    I = wi.shape[1]
    tm = _pick_tile(M, tm, 8)
    return pl.pallas_call(
        functools.partial(_ffn_res_ln_kernel, eps=eps),
        out_shape=jax.ShapeDtypeStruct((M, H), out_dtype),
        grid=(M // tm,),
        in_specs=[
            pl.BlockSpec((tm, H), lambda i: (i, 0)),
            pl.BlockSpec((H, I), lambda i: (0, 0)),
            pl.BlockSpec((1, I), lambda i: (0, 0)),
            pl.BlockSpec((I, H), lambda i: (0, 0)),
            pl.BlockSpec((1, H), lambda i: (0, 0)),
            pl.BlockSpec((1, H), lambda i: (0, 0)),
            pl.BlockSpec((1, H), lambda i: (0, 0)),
        ],
        out_specs=pl.BlockSpec((tm, H), lambda i: (i, 0)),
        compiler_params=pltpu.CompilerParams(
            dimension_semantics=("parallel",),
            vmem_limit_bytes=_VMEM_LIMIT),
    )(x.astype(jnp.bfloat16), wi, bi.reshape(1, I), wf, bf.reshape(1, H),
      gamma.reshape(1, H), beta.reshape(1, H))


def layernorm(x, gamma, beta, eps=1e-12, out_dtype=jnp.bfloat16, tm=512):
    """LayerNorm over the last axis, tiled over rows (embedding LN)."""
    M, H = x.shape
    tm = _pick_tile(M, tm, 8)
    return pl.pallas_call(
        functools.partial(_layernorm_kernel, eps=eps),
        out_shape=jax.ShapeDtypeStruct((M, H), out_dtype),
        grid=(M // tm,),
        in_specs=[pl.BlockSpec((tm, H), lambda i: (i, 0)),
                  pl.BlockSpec((1, H), lambda i: (0, 0)),
                  pl.BlockSpec((1, H), lambda i: (0, 0))],
        out_specs=pl.BlockSpec((tm, H), lambda i: (i, 0)),
        compiler_params=pltpu.CompilerParams(
            dimension_semantics=("parallel",),
            vmem_limit_bytes=_VMEM_LIMIT),
    )(x, gamma.reshape(1, H), beta.reshape(1, H))


def pooler_classifier(h0, pool_w, pool_b, cls_w, cls_b):
    """Fused pooler (tanh) + classifier; classifier width padded to CLS_PAD lanes."""
    B, H = h0.shape
    Np = cls_w.shape[1]
    return pl.pallas_call(
        _pooler_cls_kernel,
        out_shape=jax.ShapeDtypeStruct((B, Np), jnp.float32),
        in_specs=[pl.BlockSpec(memory_space=_VMEM)] * 5,
        out_specs=pl.BlockSpec(memory_space=_VMEM),
        compiler_params=pltpu.CompilerParams(vmem_limit_bytes=_VMEM_LIMIT),
    )(h0.astype(jnp.bfloat16), pool_w, pool_b.reshape(1, H),
      cls_w, cls_b.reshape(1, Np))


# ----------------------------------------------------------------------------
# Scaled-down BERT model (bert-base structure) + classification head
# ----------------------------------------------------------------------------

def init_params(key, cfg):
    H, I = cfg["hidden"], cfg["intermediate"]
    Dh = H // cfg["heads"]
    scale = 1.0 / math.sqrt(Dh)

    def nrm(k, shape, s=0.02):
        return s * jax.random.normal(k, shape, jnp.float32)

    keys = iter(jax.random.split(key, 8 + 8 * cfg["layers"]))
    emb = dict(
        word=nrm(next(keys), (cfg["vocab"], H)),
        pos=nrm(next(keys), (cfg["max_pos"], H)),
        type=nrm(next(keys), (cfg["type_vocab"], H)),
        ln_g=jnp.ones((H,), jnp.float32),
        ln_b=jnp.zeros((H,), jnp.float32),
    )
    layers = []
    for _ in range(cfg["layers"]):
        wq, wk, wv = (nrm(next(keys), (H, H)) for _ in range(3))
        bq, bk, bv = (jnp.zeros((H,), jnp.float32) for _ in range(3))
        # fuse Q/K/V into one (H, 3H) matmul; fold 1/sqrt(Dh) into the Q slice
        # of BOTH the weight and the bias (bias is zero here but stays correct
        # for pretrained checkpoints with nonzero Q bias).
        w_qkv = jnp.concatenate([wq * scale, wk, wv], axis=1).astype(jnp.bfloat16)
        b_qkv = jnp.concatenate([bq * scale, bk, bv], axis=0)
        layers.append(dict(
            w_qkv=w_qkv, b_qkv=b_qkv,
            wo=nrm(next(keys), (H, H)).astype(jnp.bfloat16),
            bo=jnp.zeros((H,), jnp.float32),
            ln1_g=jnp.ones((H,), jnp.float32), ln1_b=jnp.zeros((H,), jnp.float32),
            wi=nrm(next(keys), (H, I)).astype(jnp.bfloat16),
            bi=jnp.zeros((I,), jnp.float32),
            wf=nrm(next(keys), (I, H)).astype(jnp.bfloat16),
            bf=jnp.zeros((H,), jnp.float32),
            ln2_g=jnp.ones((H,), jnp.float32), ln2_b=jnp.zeros((H,), jnp.float32),
        ))
    # classifier weights padded to a lane-dense width (logits live in [:, :3])
    cls_w = jnp.zeros((H, CLS_PAD), jnp.float32)
    cls_w = cls_w.at[:, :cfg["num_classes"]].set(
        nrm(next(keys), (H, cfg["num_classes"])))
    params = dict(
        emb=emb, layers=layers,
        pool_w=nrm(next(keys), (H, H)).astype(jnp.bfloat16),
        pool_b=jnp.zeros((H,), jnp.float32),
        cls_w=cls_w.astype(jnp.bfloat16),
        cls_b=jnp.zeros((CLS_PAD,), jnp.float32),
    )
    return params


def bert_class_forward(params, ids, mask, token_type_ids, cfg=CFG):
    """Mirrors BERTClass.forward: pooled BERT output -> Dropout -> Linear(H, 3)."""
    B, S = ids.shape
    H, nH = cfg["hidden"], cfg["heads"]
    Dh = H // nH

    # --- embeddings (gather is JAX glue; LN is a Pallas kernel) ---
    emb = params["emb"]
    h = (emb["word"][ids]
         + emb["pos"][jnp.arange(S)][None, :, :]
         + emb["type"][token_type_ids])                             # (B, S, H) f32
    # cast summed embeddings to bf16 before the LN kernel (halves HBM traffic)
    h = layernorm(h.astype(jnp.bfloat16).reshape(B * S, H),
                  emb["ln_g"], emb["ln_b"])                         # (B*S, H) bf16
    # embedding dropout (p=0.1): inference-mode identity

    # additive attention-mask bias shared by all heads of a batch row: (B, 1, S)
    mask_bias = ((1.0 - mask.astype(jnp.float32)) * -10000.0)[:, None, :]

    # --- transformer encoder layers (3 fused pallas_calls per layer) ---
    for lyr in params["layers"]:
        qkv = matmul_bias_act(h, lyr["w_qkv"], lyr["b_qkv"])          # (B*S, 3H)
        # fused: per-head attention -> Wo proj + bias + residual + LN1
        h = attention_out_ln(qkv.reshape(B, S, 3 * H), mask_bias,
                             h.reshape(B, S, H), lyr["wo"], lyr["bo"],
                             lyr["ln1_g"], lyr["ln1_b"], nH, Dh)      # (B, S, H)
        h = h.reshape(B * S, H)
        # fused: FFN up + GELU + FFN down + bias + residual + LN2
        h = ffn_res_ln(h, lyr["wi"], lyr["bi"], lyr["wf"], lyr["bf"],
                       lyr["ln2_g"], lyr["ln2_b"])                    # (B*S, H)

    # --- pooler (tanh on token 0) -> Dropout(0.3) identity -> Linear(H, 3) ---
    h0 = h.reshape(B, S, H)[:, 0, :]
    logits_padded = pooler_classifier(h0, params["pool_w"], params["pool_b"],
                                      params["cls_w"], params["cls_b"])
    return logits_padded[:, :cfg["num_classes"]]


# ----------------------------------------------------------------------------
# main
# ----------------------------------------------------------------------------

if __name__ == "__main__":
    key = jax.random.PRNGKey(0)
    k_param, k_ids, k_type = jax.random.split(key, 3)

    B, S = 2, 8
    params = init_params(k_param, CFG)

    ids = jax.random.randint(k_ids, (B, S), 0, CFG["vocab"], dtype=jnp.int32)
    token_type_ids = jax.random.randint(k_type, (B, S), 0, CFG["type_vocab"],
                                        dtype=jnp.int32)
    # attention mask: first sequence fully valid, second has 2 padding tokens
    mask = jnp.array([[1] * S, [1] * (S - 2) + [0] * 2], dtype=jnp.int32)

    fwd = jax.jit(functools.partial(bert_class_forward, cfg=CFG))
    logits = fwd(params, ids, mask, token_type_ids)
    jax.block_until_ready(logits)

    assert logits.shape == (B, CFG["num_classes"])
    assert bool(jnp.all(jnp.isfinite(logits)))
    print("KERNEL_OK")
</pallas_src>

<mosaic_0001>
module attributes {stable_mosaic.version = 11 : i64} {
  func.func @_matmul_bias_act_kernel(%arg0: i32, %arg1: i32, %arg2: memref<16x32xbf16, #tpu.memory_space<vmem>>, %arg3: memref<32x96xbf16, #tpu.memory_space<vmem>>, %arg4: memref<1x96xf32, #tpu.memory_space<vmem>>, %arg5: memref<16x96xbf16, #tpu.memory_space<vmem>>, %arg6: memref<16x96xf32, #tpu.memory_space<vmem>>) attributes {dimension_semantics = [#tpu.dimension_semantics<parallel>, #tpu.dimension_semantics<arbitrary>], iteration_bounds = array<i64: 1, 1>, scalar_prefetch = 0 : i64, scratch_operands = 1 : i64, tpu.core_type = #tpu.core_type<tc>, window_params = [{transform_indices = @transform_0, window_bounds = array<i64: 16, 32>}, {transform_indices = @transform_1, window_bounds = array<i64: 32, 96>}, {pipeline_mode = #tpu.pipeline_mode<synchronous>, transform_indices = @transform_2, window_bounds = array<i64: 1, 96>}, {transform_indices = @transform_3, window_bounds = array<i64: 16, 96>}]} {
    %c0_i32 = arith.constant 0 : i32
    %0 = arith.cmpi eq, %arg1, %c0_i32 : i32
    %1 = arith.extui %0 : i1 to i32
    %c0_i32_0 = arith.constant 0 : i32
    %2 = arith.cmpi ne, %1, %c0_i32_0 : i32
    scf.if %2 {
      %cst_10 = arith.constant 0.000000e+00 : f32
      %12 = vector.broadcast %cst_10 : f32 to vector<16x96xf32>
      %c0_11 = arith.constant 0 : index
      %c0_12 = arith.constant 0 : index
      %13 = vector.load %arg6[%c0_11, %c0_12] : memref<16x96xf32, #tpu.memory_space<vmem>>, vector<16x96xf32>
      tpu.vector_store %arg6[%c0_11, %c0_12], %12 {strides = array<i32>} : memref<16x96xf32, #tpu.memory_space<vmem>>, vector<16x96xf32>,
    } else {
    }
    %c0 = arith.constant 0 : index
    %c0_1 = arith.constant 0 : index
    %3 = vector.load %arg6[%c0, %c0_1] : memref<16x96xf32, #tpu.memory_space<vmem>>, vector<16x96xf32>
    %c0_2 = arith.constant 0 : index
    %c0_3 = arith.constant 0 : index
    %4 = vector.load %arg2[%c0_2, %c0_3] : memref<16x32xbf16, #tpu.memory_space<vmem>>, vector<16x32xbf16>
    %c0_4 = arith.constant 0 : index
    %c0_5 = arith.constant 0 : index
    %5 = vector.load %arg3[%c0_4, %c0_5] : memref<32x96xbf16, #tpu.memory_space<vmem>>, vector<32x96xbf16>
    %cst = arith.constant dense<0.000000e+00> : vector<16x96xf32>
    %6 = tpu.matmul %4, %5, %cst {dimension_numbers = #tpu.dot_dimension_numbers<[1], [0], [0], [1], [0, 0, 1, 1], [], []>} : vector<16x32xbf16>, vector<32x96xbf16>, vector<16x96xf32> -> vector<16x96xf32>
    %7 = arith.addf %3, %6 : vector<16x96xf32>
    %c0_6 = arith.constant 0 : index
    %c0_7 = arith.constant 0 : index
    %8 = vector.load %arg6[%c0_6, %c0_7] : memref<16x96xf32, #tpu.memory_space<vmem>>, vector<16x96xf32>
    tpu.vector_store %arg6[%c0_6, %c0_7], %7 {strides = array<i32>} : memref<16x96xf32, #tpu.memory_space<vmem>>, vector<16x96xf32>,
    %c0_i32_8 = arith.constant 0 : i32
    %9 = arith.cmpi eq, %arg1, %c0_i32_8 : i32
    %10 = arith.extui %9 : i1 to i32
    %c0_i32_9 = arith.constant 0 : i32
    %11 = arith.cmpi ne, %10, %c0_i32_9 : i32
    scf.if %11 {
      %c0_10 = arith.constant 0 : index
      %c0_11 = arith.constant 0 : index
      %12 = vector.load %arg6[%c0_10, %c0_11] : memref<16x96xf32, #tpu.memory_space<vmem>>, vector<16x96xf32>
      %c0_12 = arith.constant 0 : index
      %c0_13 = arith.constant 0 : index
      %13 = vector.load %arg4[%c0_12, %c0_13] : memref<1x96xf32, #tpu.memory_space<vmem>>, vector<1x96xf32>
      %14 = vector.broadcast %13 : vector<1x96xf32> to vector<16x96xf32>
      %15 = arith.addf %12, %14 : vector<16x96xf32>
      %16 = arith.truncf %15 : vector<16x96xf32> to vector<16x96xbf16>
      %c0_14 = arith.constant 0 : index
      %c0_15 = arith.constant 0 : index
      %17 = vector.load %arg5[%c0_14, %c0_15] : memref<16x96xbf16, #tpu.memory_space<vmem>>, vector<16x96xbf16>
      tpu.vector_store %arg5[%c0_14, %c0_15], %16 {strides = array<i32>} : memref<16x96xbf16, #tpu.memory_space<vmem>>, vector<16x96xbf16>,
    } else {
    }
    return
  }
  func.func @transform_0(%arg0: i32, %arg1: i32) -> (i32, i32) {
    %c0_i32 = arith.constant 0 : i32
    return %arg0, %arg1 : i32, i32
  }
  func.func @transform_1(%arg0: i32, %arg1: i32) -> (i32, i32) {
    %c0_i32 = arith.constant 0 : i32
    %c0_i32_0 = arith.constant 0 : i32
    return %arg1, %c0_i32 : i32, i32
  }
  func.func @transform_2(%arg0: i32, %arg1: i32) -> (i32, i32) {
    %c0_i32 = arith.constant 0 : i32
    %c0_i32_0 = arith.constant 0 : i32
    %c0_i32_1 = arith.constant 0 : i32
    return %c0_i32, %c0_i32_0 : i32, i32
  }
  func.func @transform_3(%arg0: i32, %arg1: i32) -> (i32, i32) {
    %c0_i32 = arith.constant 0 : i32
    %c0_i32_0 = arith.constant 0 : i32
    return %arg0, %c0_i32 : i32, i32
  }
}

module attributes {stable_mosaic.version = 11 : i64} {
  func.func @_attn_out_ln_kernel(%arg0: i32, %arg1: memref<1x8x96xbf16, #tpu.memory_space<vmem>>, %arg2: memref<1x1x8xf32, #tpu.memory_space<vmem>>, %arg3: memref<1x8x32xbf16, #tpu.memory_space<vmem>>, %arg4: memref<32x32xbf16, #tpu.memory_space<vmem>>, %arg5: memref<1x32xf32, #tpu.memory_space<vmem>>, %arg6: memref<1x32xf32, #tpu.memory_space<vmem>>, %arg7: memref<1x32xf32, #tpu.memory_space<vmem>>, %arg8: memref<1x8x32xbf16, #tpu.memory_space<vmem>>, %arg9: memref<8x32xf32, #tpu.memory_space<vmem>>) attributes {dimension_semantics = [#tpu.dimension_semantics<parallel>], iteration_bounds = array<i64: 2>, scalar_prefetch = 0 : i64, scratch_operands = 1 : i64, tpu.core_type = #tpu.core_type<tc>, window_params = [{transform_indices = @transform_0, window_bounds = array<i64: 1, 8, 96>}, {transform_indices = @transform_1, window_bounds = array<i64: 1, 1, 8>}, {transform_indices = @transform_2, window_bounds = array<i64: 1, 8, 32>}, {pipeline_mode = #tpu.pipeline_mode<synchronous>, transform_indices = @transform_3, window_bounds = array<i64: 32, 32>}, {pipeline_mode = #tpu.pipeline_mode<synchronous>, transform_indices = @transform_4, window_bounds = array<i64: 1, 32>}, {pipeline_mode = #tpu.pipeline_mode<synchronous>, transform_indices = @transform_5, window_bounds = array<i64: 1, 32>}, {pipeline_mode = #tpu.pipeline_mode<synchronous>, transform_indices = @transform_6, window_bounds = array<i64: 1, 32>}, {transform_indices = @transform_7, window_bounds = array<i64: 1, 8, 32>}]} {
    %c0 = arith.constant 0 : index
    %c0_0 = arith.constant 0 : index
    %c0_1 = arith.constant 0 : index
    %0 = vector.load %arg1[%c0, %c0_0, %c0_1] : memref<1x8x96xbf16, #tpu.memory_space<vmem>>, vector<1x8x96xbf16>
    %1 = vector.shape_cast %0 : vector<1x8x96xbf16> to vector<8x96xbf16>
    %c0_2 = arith.constant 0 : index
    %c0_3 = arith.constant 0 : index
    %c0_4 = arith.constant 0 : index
    %2 = vector.load %arg2[%c0_2, %c0_3, %c0_4] : memref<1x1x8xf32, #tpu.memory_space<vmem>>, vector<1x1x8xf32>
    %3 = vector.shape_cast %2 : vector<1x1x8xf32> to vector<1x8xf32>
    %4 = vector.extract_strided_slice %1 {offsets = [0, 0], sizes = [8, 8], strides = [1, 1]} : vector<8x96xbf16> to vector<8x8xbf16>
    %5 = vector.extract_strided_slice %1 {offsets = [0, 32], sizes = [8, 8], strides = [1, 1]} : vector<8x96xbf16> to vector<8x8xbf16>
    %6 = vector.extract_strided_slice %1 {offsets = [0, 64], sizes = [8, 8], strides = [1, 1]} : vector<8x96xbf16> to vector<8x8xbf16>
    %cst = arith.constant dense<0.000000e+00> : vector<8x8xf32>
    %7 = tpu.matmul %4, %5, %cst {dimension_numbers = #tpu.dot_dimension_numbers<[1], [1], [0], [0], [0, 0, 1, 0], [], []>} : vector<8x8xbf16>, vector<8x8xbf16>, vector<8x8xf32> -> vector<8x8xf32>
    %8 = vector.broadcast %3 : vector<1x8xf32> to vector<8x8xf32>
    %9 = arith.addf %7, %8 : vector<8x8xf32>
    %cst_5 = arith.constant dense<0xFF800000> : vector<8xf32>
    %10 = vector.multi_reduction <maximumf>, %9, %cst_5 [1] : vector<8x8xf32> to vector<8xf32>
    %11 = vector.shape_cast %10 : vector<8xf32> to vector<8x1xf32>
    %12 = vector.broadcast %11 : vector<8x1xf32> to vector<8x8xf32>
    %13 = arith.subf %9, %12 : vector<8x8xf32>
    %14 = math.exp %13 : vector<8x8xf32>
    %cst_6 = arith.constant dense<0.000000e+00> : vector<8xf32>
    %15 = vector.multi_reduction <add>, %14, %cst_6 [1] : vector<8x8xf32> to vector<8xf32>
    %16 = vector.shape_cast %15 : vector<8xf32> to vector<8x1xf32>
    %17 = tpu.reciprocal %16 {approx = true} : vector<8x1xf32> -> vector<8x1xf32>
    %18 = vector.broadcast %17 : vector<8x1xf32> to vector<8x8xf32>
    %19 = arith.mulf %14, %18 : vector<8x8xf32>
    %20 = arith.truncf %19 : vector<8x8xf32> to vector<8x8xbf16>
    %cst_7 = arith.constant dense<0.000000e+00> : vector<8x8xf32>
    %21 = tpu.matmul %20, %6, %cst_7 {dimension_numbers = #tpu.dot_dimension_numbers<[1], [0], [0], [1], [0, 0, 1, 1], [], []>} : vector<8x8xbf16>, vector<8x8xbf16>, vector<8x8xf32> -> vector<8x8xf32>
    %c0_8 = arith.constant 0 : index
    %c0_9 = arith.constant 0 : index
    %22 = vector.load %arg9[%c0_8, %c0_9] : memref<8x32xf32, #tpu.memory_space<vmem>>, vector<8x8xf32>
    tpu.vector_store %arg9[%c0_8, %c0_9], %21 {strides = array<i32>} : memref<8x32xf32, #tpu.memory_space<vmem>>, vector<8x8xf32>,
    %23 = vector.extract_strided_slice %1 {offsets = [0, 8], sizes = [8, 8], strides = [1, 1]} : vector<8x96xbf16> to vector<8x8xbf16>
    %24 = vector.extract_strided_slice %1 {offsets = [0, 40], sizes = [8, 8], strides = [1, 1]} : vector<8x96xbf16> to vector<8x8xbf16>
    %25 = vector.extract_strided_slice %1 {offsets = [0, 72], sizes = [8, 8], strides = [1, 1]} : vector<8x96xbf16> to vector<8x8xbf16>
    %cst_10 = arith.constant dense<0.000000e+00> : vector<8x8xf32>
    %26 = tpu.matmul %23, %24, %cst_10 {dimension_numbers = #tpu.dot_dimension_numbers<[1], [1], [0], [0], [0, 0, 1, 0], [], []>} : vector<8x8xbf16>, vector<8x8xbf16>, vector<8x8xf32> -> vector<8x8xf32>
    %27 = vector.broadcast %3 : vector<1x8xf32> to vector<8x8xf32>
    %28 = arith.addf %26, %27 : vector<8x8xf32>
    %cst_11 = arith.constant dense<0xFF800000> : vector<8xf32>
    %29 = vector.multi_reduction <maximumf>, %28, %cst_11 [1] : vector<8x8xf32> to vector<8xf32>
    %30 = vector.shape_cast %29 : vector<8xf32> to vector<8x1xf32>
    %31 = vector.broadcast %30 : vector<8x1xf32> to vector<8x8xf32>
    %32 = arith.subf %28, %31 : vector<8x8xf32>
    %33 = math.exp %32 : vector<8x8xf32>
    %cst_12 = arith.constant dense<0.000000e+00> : vector<8xf32>
    %34 = vector.multi_reduction <add>, %33, %cst_12 [1] : vector<8x8xf32> to vector<8xf32>
    %35 = vector.shape_cast %34 : vector<8xf32> to vector<8x1xf32>
    %36 = tpu.reciprocal %35 {approx = true} : vector<8x1xf32> -> vector<8x1xf32>
    %37 = vector.broadcast %36 : vector<8x1xf32> to vector<8x8xf32>
    %38 = arith.mulf %33, %37 : vector<8x8xf32>
    %39 = arith.truncf %38 : vector<8x8xf32> to vector<8x8xbf16>
    %cst_13 = arith.constant dense<0.000000e+00> : vector<8x8xf32>
    %40 = tpu.matmul %39, %25, %cst_13 {dimension_numbers = #tpu.dot_dimension_numbers<[1], [0], [0], [1], [0, 0, 1, 1], [], []>} : vector<8x8xbf16>, vector<8x8xbf16>, vector<8x8xf32> -> vector<8x8xf32>
    %c0_14 = arith.constant 0 : index
    %c8 = arith.constant 8 : index
    %41 = vector.load %arg9[%c0_14, %c8] : memref<8x32xf32, #tpu.memory_space<vmem>>, vector<8x8xf32>
    tpu.vector_store %arg9[%c0_14, %c8], %40 {strides = array<i32>} : memref<8x32xf32, #tpu.memory_space<vmem>>, vector<8x8xf32>,
    %42 = vector.extract_strided_slice %1 {offsets = [0, 16], sizes = [8, 8], strides = [1, 1]} : vector<8x96xbf16> to vector<8x8xbf16>
    %43 = vector.extract_strided_slice %1 {offsets = [0, 48], sizes = [8, 8], strides = [1, 1]} : vector<8x96xbf16> to vector<8x8xbf16>
    %44 = vector.extract_strided_slice %1 {offsets = [0, 80], sizes = [8, 8], strides = [1, 1]} : vector<8x96xbf16> to vector<8x8xbf16>
    %cst_15 = arith.constant dense<0.000000e+00> : vector<8x8xf32>
    %45 = tpu.matmul %42, %43, %cst_15 {dimension_numbers = #tpu.dot_dimension_numbers<[1], [1], [0], [0], [0, 0, 1, 0], [], []>} : vector<8x8xbf16>, vector<8x8xbf16>, vector<8x8xf32> -> vector<8x8xf32>
    %46 = vector.broadcast %3 : vector<1x8xf32> to vector<8x8xf32>
    %47 = arith.addf %45, %46 : vector<8x8xf32>
    %cst_16 = arith.constant dense<0xFF800000> : vector<8xf32>
    %48 = vector.multi_reduction <maximumf>, %47, %cst_16 [1] : vector<8x8xf32> to vector<8xf32>
    %49 = vector.shape_cast %48 : vector<8xf32> to vector<8x1xf32>
    %50 = vector.broadcast %49 : vector<8x1xf32> to vector<8x8xf32>
    %51 = arith.subf %47, %50 : vector<8x8xf32>
    %52 = math.exp %51 : vector<8x8xf32>
    %cst_17 = arith.constant dense<0.000000e+00> : vector<8xf32>
    %53 = vector.multi_reduction <add>, %52, %cst_17 [1] : vector<8x8xf32> to vector<8xf32>
    %54 = vector.shape_cast %53 : vector<8xf32> to vector<8x1xf32>
    %55 = tpu.reciprocal %54 {approx = true} : vector<8x1xf32> -> vector<8x1xf32>
    %56 = vector.broadcast %55 : vector<8x1xf32> to vector<8x8xf32>
    %57 = arith.mulf %52, %56 : vector<8x8xf32>
    %58 = arith.truncf %57 : vector<8x8xf32> to vector<8x8xbf16>
    %cst_18 = arith.constant dense<0.000000e+00> : vector<8x8xf32>
    %59 = tpu.matmul %58, %44, %cst_18 {dimension_numbers = #tpu.dot_dimension_numbers<[1], [0], [0], [1], [0, 0, 1, 1], [], []>} : vector<8x8xbf16>, vector<8x8xbf16>, vector<8x8xf32> -> vector<8x8xf32>
    %c0_19 = arith.constant 0 : index
    %c16 = arith.constant 16 : index
    %60 = vector.load %arg9[%c0_19, %c16] : memref<8x32xf32, #tpu.memory_space<vmem>>, vector<8x8xf32>
    tpu.vector_store %arg9[%c0_19, %c16], %59 {strides = array<i32>} : memref<8x32xf32, #tpu.memory_space<vmem>>, vector<8x8xf32>,
    %61 = vector.extract_strided_slice %1 {offsets = [0, 24], sizes = [8, 8], strides = [1, 1]} : vector<8x96xbf16> to vector<8x8xbf16>
    %62 = vector.extract_strided_slice %1 {offsets = [0, 56], sizes = [8, 8], strides = [1, 1]} : vector<8x96xbf16> to vector<8x8xbf16>
    %63 = vector.extract_strided_slice %1 {offsets = [0, 88], sizes = [8, 8], strides = [1, 1]} : vector<8x96xbf16> to vector<8x8xbf16>
    %cst_20 = arith.constant dense<0.000000e+00> : vector<8x8xf32>
    %64 = tpu.matmul %61, %62, %cst_20 {dimension_numbers = #tpu.dot_dimension_numbers<[1], [1], [0], [0], [0, 0, 1, 0], [], []>} : vector<8x8xbf16>, vector<8x8xbf16>, vector<8x8xf32> -> vector<8x8xf32>
    %65 = vector.broadcast %3 : vector<1x8xf32> to vector<8x8xf32>
    %66 = arith.addf %64, %65 : vector<8x8xf32>
    %cst_21 = arith.constant dense<0xFF800000> : vector<8xf32>
    %67 = vector.multi_reduction <maximumf>, %66, %cst_21 [1] : vector<8x8xf32> to vector<8xf32>
    %68 = vector.shape_cast %67 : vector<8xf32> to vector<8x1xf32>
    %69 = vector.broadcast %68 : vector<8x1xf32> to vector<8x8xf32>
    %70 = arith.subf %66, %69 : vector<8x8xf32>
    %71 = math.exp %70 : vector<8x8xf32>
    %cst_22 = arith.constant dense<0.000000e+00> : vector<8xf32>
    %72 = vector.multi_reduction <add>, %71, %cst_22 [1] : vector<8x8xf32> to vector<8xf32>
    %73 = vector.shape_cast %72 : vector<8xf32> to vector<8x1xf32>
    %74 = tpu.reciprocal %73 {approx = true} : vector<8x1xf32> -> vector<8x1xf32>
    %75 = vector.broadcast %74 : vector<8x1xf32> to vector<8x8xf32>
    %76 = arith.mulf %71, %75 : vector<8x8xf32>
    %77 = arith.truncf %76 : vector<8x8xf32> to vector<8x8xbf16>
    %cst_23 = arith.constant dense<0.000000e+00> : vector<8x8xf32>
    %78 = tpu.matmul %77, %63, %cst_23 {dimension_numbers = #tpu.dot_dimension_numbers<[1], [0], [0], [1], [0, 0, 1, 1], [], []>} : vector<8x8xbf16>, vector<8x8xbf16>, vector<8x8xf32> -> vector<8x8xf32>
    %c0_24 = arith.constant 0 : index
    %c24 = arith.constant 24 : index
    %79 = vector.load %arg9[%c0_24, %c24] : memref<8x32xf32, #tpu.memory_space<vmem>>, vector<8x8xf32>
    tpu.vector_store %arg9[%c0_24, %c24], %78 {strides = array<i32>} : memref<8x32xf32, #tpu.memory_space<vmem>>, vector<8x8xf32>,
    %c0_25 = arith.constant 0 : index
    %c0_26 = arith.constant 0 : index
    %80 = vector.load %arg9[%c0_25, %c0_26] : memref<8x32xf32, #tpu.memory_space<vmem>>, vector<8x32xf32>
    %81 = arith.truncf %80 : vector<8x32xf32> to vector<8x32xbf16>
    %c0_27 = arith.constant 0 : index
    %c0_28 = arith.constant 0 : index
    %82 = vector.load %arg4[%c0_27, %c0_28] : memref<32x32xbf16, #tpu.memory_space<vmem>>, vector<32x32xbf16>
    %cst_29 = arith.constant dense<0.000000e+00> : vector<8x32xf32>
    %83 = tpu.matmul %81, %82, %cst_29 {dimension_numbers = #tpu.dot_dimension_numbers<[1], [0], [0], [1], [0, 0, 1, 1], [], []>} : vector<8x32xbf16>, vector<32x32xbf16>, vector<8x32xf32> -> vector<8x32xf32>
    %c0_30 = arith.constant 0 : index
    %c0_31 = arith.constant 0 : index
    %84 = vector.load %arg5[%c0_30, %c0_31] : memref<1x32xf32, #tpu.memory_space<vmem>>, vector<1x32xf32>
    %85 = vector.broadcast %84 : vector<1x32xf32> to vector<8x32xf32>
    %86 = arith.addf %83, %85 : vector<8x32xf32>
    %c0_32 = arith.constant 0 : index
    %c0_33 = arith.constant 0 : index
    %c0_34 = arith.constant 0 : index
    %87 = vector.load %arg3[%c0_32, %c0_33, %c0_34] : memref<1x8x32xbf16, #tpu.memory_space<vmem>>, vector<1x8x32xbf16>
    %88 = vector.shape_cast %87 : vector<1x8x32xbf16> to vector<8x32xbf16>
    %89 = arith.extf %88 : vector<8x32xbf16> to vector<8x32xf32>
    %90 = arith.addf %86, %89 : vector<8x32xf32>
    %cst_35 = arith.constant dense<0.000000e+00> : vector<8xf32>
    %91 = vector.multi_reduction <add>, %90, %cst_35 [1] : vector<8x32xf32> to vector<8xf32>
    %92 = vector.shape_cast %91 : vector<8xf32> to vector<8x1xf32>
    %cst_36 = arith.constant 3.200000e+01 : f32
    %93 = vector.broadcast %cst_36 : f32 to vector<8x1xf32>
    %94 = arith.divf %92, %93 : vector<8x1xf32>
    %95 = vector.broadcast %94 : vector<8x1xf32> to vector<8x32xf32>
    %96 = arith.subf %90, %95 : vector<8x32xf32>
    %97 = arith.mulf %96, %96 : vector<8x32xf32>
    %cst_37 = arith.constant dense<0.000000e+00> : vector<8xf32>
    %98 = vector.multi_reduction <add>, %97, %cst_37 [1] : vector<8x32xf32> to vector<8xf32>
    %99 = vector.shape_cast %98 : vector<8xf32> to vector<8x1xf32>
    %cst_38 = arith.constant 3.200000e+01 : f32
    %100 = vector.broadcast %cst_38 : f32 to vector<8x1xf32>
    %101 = arith.divf %99, %100 : vector<8x1xf32>
    %102 = vector.broadcast %94 : vector<8x1xf32> to vector<8x32xf32>
    %103 = arith.subf %90, %102 : vector<8x32xf32>
    %cst_39 = arith.constant 9.99999996E-13 : f32
    %104 = vector.broadcast %cst_39 : f32 to vector<8x1xf32>
    %105 = arith.addf %101, %104 : vector<8x1xf32>
    %106 = math.rsqrt %105 : vector<8x1xf32>
    %107 = vector.broadcast %106 : vector<8x1xf32> to vector<8x32xf32>
    %108 = arith.mulf %103, %107 : vector<8x32xf32>
    %c0_40 = arith.constant 0 : index
    %c0_41 = arith.constant 0 : index
    %109 = vector.load %arg6[%c0_40, %c0_41] : memref<1x32xf32, #tpu.memory_space<vmem>>, vector<1x32xf32>
    %110 = vector.broadcast %109 : vector<1x32xf32> to vector<8x32xf32>
    %111 = arith.mulf %108, %110 : vector<8x32xf32>
    %c0_42 = arith.constant 0 : index
    %c0_43 = arith.constant 0 : index
    %112 = vector.load %arg7[%c0_42, %c0_43] : memref<1x32xf32, #tpu.memory_space<vmem>>, vector<1x32xf32>
    %113 = vector.broadcast %112 : vector<1x32xf32> to vector<8x32xf32>
    %114 = arith.addf %111, %113 : vector<8x32xf32>
    %115 = arith.truncf %114 : vector<8x32xf32> to vector<8x32xbf16>
    %c0_44 = arith.constant 0 : index
    %c0_45 = arith.constant 0 : index
    %c0_46 = arith.constant 0 : index
    %116 = vector.load %arg8[%c0_44, %c0_45, %c0_46] : memref<1x8x32xbf16, #tpu.memory_space<vmem>>, vector<1x8x32xbf16>
    %117 = vector.shape_cast %116 : vector<1x8x32xbf16> to vector<8x32xbf16>
    %118 = vector.shape_cast %115 : vector<8x32xbf16> to vector<1x8x32xbf16>
    tpu.vector_store %arg8[%c0_44, %c0_45, %c0_46], %118 {strides = array<i32>} : memref<1x8x32xbf16, #tpu.memory_space<vmem>>, vector<1x8x32xbf16>,
    return
  }
  func.func @transform_0(%arg0: i32) -> (i32, i32, i32) {
    %c0_i32 = arith.constant 0 : i32
    %c0_i32_0 = arith.constant 0 : i32
    %c0_i32_1 = arith.constant 0 : i32
    return %arg0, %c0_i32, %c0_i32_0 : i32, i32, i32
  }
  func.func @transform_1(%arg0: i32) -> (i32, i32, i32) {
    %c0_i32 = arith.constant 0 : i32
    %c0_i32_0 = arith.constant 0 : i32
    %c0_i32_1 = arith.constant 0 : i32
    return %arg0, %c0_i32, %c0_i32_0 : i32, i32, i32
  }
  func.func @transform_2(%arg0: i32) -> (i32, i32, i32) {
    %c0_i32 = arith.constant 0 : i32
    %c0_i32_0 = arith.constant 0 : i32
    %c0_i32_1 = arith.constant 0 : i32
    return %arg0, %c0_i32, %c0_i32_0 : i32, i32, i32
  }
  func.func @transform_3(%arg0: i32) -> (i32, i32) {
    %c0_i32 = arith.constant 0 : i32
    %c0_i32_0 = arith.constant 0 : i32
    %c0_i32_1 = arith.constant 0 : i32
    return %c0_i32, %c0_i32_0 : i32, i32
  }
  func.func @transform_4(%arg0: i32) -> (i32, i32) {
    %c0_i32 = arith.constant 0 : i32
    %c0_i32_0 = arith.constant 0 : i32
    %c0_i32_1 = arith.constant 0 : i32
    return %c0_i32, %c0_i32_0 : i32, i32
  }
  func.func @transform_5(%arg0: i32) -> (i32, i32) {
    %c0_i32 = arith.constant 0 : i32
    %c0_i32_0 = arith.constant 0 : i32
    %c0_i32_1 = arith.constant 0 : i32
    return %c0_i32, %c0_i32_0 : i32, i32
  }
  func.func @transform_6(%arg0: i32) -> (i32, i32) {
    %c0_i32 = arith.constant 0 : i32
    %c0_i32_0 = arith.constant 0 : i32
    %c0_i32_1 = arith.constant 0 : i32
    return %c0_i32, %c0_i32_0 : i32, i32
  }
  func.func @transform_7(%arg0: i32) -> (i32, i32, i32) {
    %c0_i32 = arith.constant 0 : i32
    %c0_i32_0 = arith.constant 0 : i32
    %c0_i32_1 = arith.constant 0 : i32
    return %arg0, %c0_i32, %c0_i32_0 : i32, i32, i32
  }
}

module attributes {stable_mosaic.version = 11 : i64} {
  func.func @_layernorm_kernel(%arg0: i32, %arg1: memref<16x32xbf16, #tpu.memory_space<vmem>>, %arg2: memref<1x32xf32, #tpu.memory_space<vmem>>, %arg3: memref<1x32xf32, #tpu.memory_space<vmem>>, %arg4: memref<16x32xbf16, #tpu.memory_space<vmem>>) attributes {dimension_semantics = [#tpu.dimension_semantics<parallel>], iteration_bounds = array<i64: 1>, scalar_prefetch = 0 : i64, scratch_operands = 0 : i64, tpu.core_type = #tpu.core_type<tc>, window_params = [{transform_indices = @transform_0, window_bounds = array<i64: 16, 32>}, {pipeline_mode = #tpu.pipeline_mode<synchronous>, transform_indices = @transform_1, window_bounds = array<i64: 1, 32>}, {pipeline_mode = #tpu.pipeline_mode<synchronous>, transform_indices = @transform_2, window_bounds = array<i64: 1, 32>}, {transform_indices = @transform_3, window_bounds = array<i64: 16, 32>}]} {
    %c0 = arith.constant 0 : index
    %c0_0 = arith.constant 0 : index
    %0 = vector.load %arg1[%c0, %c0_0] : memref<16x32xbf16, #tpu.memory_space<vmem>>, vector<16x32xbf16>
    %1 = arith.extf %0 : vector<16x32xbf16> to vector<16x32xf32>
    %cst = arith.constant dense<0.000000e+00> : vector<16xf32>
    %2 = vector.multi_reduction <add>, %1, %cst [1] : vector<16x32xf32> to vector<16xf32>
    %3 = vector.shape_cast %2 : vector<16xf32> to vector<16x1xf32>
    %cst_1 = arith.constant 3.200000e+01 : f32
    %4 = vector.broadcast %cst_1 : f32 to vector<16x1xf32>
    %5 = arith.divf %3, %4 : vector<16x1xf32>
    %6 = vector.broadcast %5 : vector<16x1xf32> to vector<16x32xf32>
    %7 = arith.subf %1, %6 : vector<16x32xf32>
    %8 = arith.mulf %7, %7 : vector<16x32xf32>
    %cst_2 = arith.constant dense<0.000000e+00> : vector<16xf32>
    %9 = vector.multi_reduction <add>, %8, %cst_2 [1] : vector<16x32xf32> to vector<16xf32>
    %10 = vector.shape_cast %9 : vector<16xf32> to vector<16x1xf32>
    %cst_3 = arith.constant 3.200000e+01 : f32
    %11 = vector.broadcast %cst_3 : f32 to vector<16x1xf32>
    %12 = arith.divf %10, %11 : vector<16x1xf32>
    %13 = vector.broadcast %5 : vector<16x1xf32> to vector<16x32xf32>
    %14 = arith.subf %1, %13 : vector<16x32xf32>
    %cst_4 = arith.constant 9.99999996E-13 : f32
    %15 = vector.broadcast %cst_4 : f32 to vector<16x1xf32>
    %16 = arith.addf %12, %15 : vector<16x1xf32>
    %17 = math.rsqrt %16 : vector<16x1xf32>
    %18 = vector.broadcast %17 : vector<16x1xf32> to vector<16x32xf32>
    %19 = arith.mulf %14, %18 : vector<16x32xf32>
    %c0_5 = arith.constant 0 : index
    %c0_6 = arith.constant 0 : index
    %20 = vector.load %arg2[%c0_5, %c0_6] : memref<1x32xf32, #tpu.memory_space<vmem>>, vector<1x32xf32>
    %21 = vector.broadcast %20 : vector<1x32xf32> to vector<16x32xf32>
    %22 = arith.mulf %19, %21 : vector<16x32xf32>
    %c0_7 = arith.constant 0 : index
    %c0_8 = arith.constant 0 : index
    %23 = vector.load %arg3[%c0_7, %c0_8] : memref<1x32xf32, #tpu.memory_space<vmem>>, vector<1x32xf32>
    %24 = vector.broadcast %23 : vector<1x32xf32> to vector<16x32xf32>
    %25 = arith.addf %22, %24 : vector<16x32xf32>
    %26 = arith.truncf %25 : vector<16x32xf32> to vector<16x32xbf16>
    %c0_9 = arith.constant 0 : index
    %c0_10 = arith.constant 0 : index
    %27 = vector.load %arg4[%c0_9, %c0_10] : memref<16x32xbf16, #tpu.memory_space<vmem>>, vector<16x32xbf16>
    tpu.vector_store %arg4[%c0_9, %c0_10], %26 {strides = array<i32>} : memref<16x32xbf16, #tpu.memory_space<vmem>>, vector<16x32xbf16>,
    return
  }
  func.func @transform_0(%arg0: i32) -> (i32, i32) {
    %c0_i32 = arith.constant 0 : i32
    %c0_i32_0 = arith.constant 0 : i32
    return %arg0, %c0_i32 : i32, i32
  }
  func.func @transform_1(%arg0: i32) -> (i32, i32) {
    %c0_i32 = arith.constant 0 : i32
    %c0_i32_0 = arith.constant 0 : i32
    %c0_i32_1 = arith.constant 0 : i32
    return %c0_i32, %c0_i32_0 : i32, i32
  }
  func.func @transform_2(%arg0: i32) -> (i32, i32) {
    %c0_i32 = arith.constant 0 : i32
    %c0_i32_0 = arith.constant 0 : i32
    %c0_i32_1 = arith.constant 0 : i32
    return %c0_i32, %c0_i32_0 : i32, i32
  }
  func.func @transform_3(%arg0: i32) -> (i32, i32) {
    %c0_i32 = arith.constant 0 : i32
    %c0_i32_0 = arith.constant 0 : i32
    return %arg0, %c0_i32 : i32, i32
  }
}

module attributes {stable_mosaic.version = 11 : i64} {
  func.func @_ffn_res_ln_kernel(%arg0: i32, %arg1: memref<16x32xbf16, #tpu.memory_space<vmem>>, %arg2: memref<32x64xbf16, #tpu.memory_space<vmem>>, %arg3: memref<1x64xf32, #tpu.memory_space<vmem>>, %arg4: memref<64x32xbf16, #tpu.memory_space<vmem>>, %arg5: memref<1x32xf32, #tpu.memory_space<vmem>>, %arg6: memref<1x32xf32, #tpu.memory_space<vmem>>, %arg7: memref<1x32xf32, #tpu.memory_space<vmem>>, %arg8: memref<16x32xbf16, #tpu.memory_space<vmem>>) attributes {dimension_semantics = [#tpu.dimension_semantics<parallel>], iteration_bounds = array<i64: 1>, scalar_prefetch = 0 : i64, scratch_operands = 0 : i64, tpu.core_type = #tpu.core_type<tc>, window_params = [{transform_indices = @transform_0, window_bounds = array<i64: 16, 32>}, {pipeline_mode = #tpu.pipeline_mode<synchronous>, transform_indices = @transform_1, window_bounds = array<i64: 32, 64>}, {pipeline_mode = #tpu.pipeline_mode<synchronous>, transform_indices = @transform_2, window_bounds = array<i64: 1, 64>}, {pipeline_mode = #tpu.pipeline_mode<synchronous>, transform_indices = @transform_3, window_bounds = array<i64: 64, 32>}, {pipeline_mode = #tpu.pipeline_mode<synchronous>, transform_indices = @transform_4, window_bounds = array<i64: 1, 32>}, {pipeline_mode = #tpu.pipeline_mode<synchronous>, transform_indices = @transform_5, window_bounds = array<i64: 1, 32>}, {pipeline_mode = #tpu.pipeline_mode<synchronous>, transform_indices = @transform_6, window_bounds = array<i64: 1, 32>}, {transform_indices = @transform_7, window_bounds = array<i64: 16, 32>}]} {
    %c0 = arith.constant 0 : index
    %c0_0 = arith.constant 0 : index
    %0 = vector.load %arg1[%c0, %c0_0] : memref<16x32xbf16, #tpu.memory_space<vmem>>, vector<16x32xbf16>
    %c0_1 = arith.constant 0 : index
    %c0_2 = arith.constant 0 : index
    %1 = vector.load %arg2[%c0_1, %c0_2] : memref<32x64xbf16, #tpu.memory_space<vmem>>, vector<32x64xbf16>
    %cst = arith.constant dense<0.000000e+00> : vector<16x64xf32>
    %2 = tpu.matmul %0, %1, %cst {dimension_numbers = #tpu.dot_dimension_numbers<[1], [0], [0], [1], [0, 0, 1, 1], [], []>} : vector<16x32xbf16>, vector<32x64xbf16>, vector<16x64xf32> -> vector<16x64xf32>
    %c0_3 = arith.constant 0 : index
    %c0_4 = arith.constant 0 : index
    %3 = vector.load %arg3[%c0_3, %c0_4] : memref<1x64xf32, #tpu.memory_space<vmem>>, vector<1x64xf32>
    %4 = vector.broadcast %3 : vector<1x64xf32> to vector<16x64xf32>
    %5 = arith.addf %2, %4 : vector<16x64xf32>
    %6 = arith.mulf %5, %5 : vector<16x64xf32>
    %7 = arith.mulf %5, %6 : vector<16x64xf32>
    %cst_5 = arith.constant 4.471500e-02 : f32
    %8 = vector.broadcast %cst_5 : f32 to vector<16x64xf32>
    %9 = arith.mulf %8, %7 : vector<16x64xf32>
    %10 = arith.addf %5, %9 : vector<16x64xf32>
    %cst_6 = arith.constant 0.797884583 : f32
    %11 = vector.broadcast %cst_6 : f32 to vector<16x64xf32>
    %12 = arith.mulf %11, %10 : vector<16x64xf32>
    %13 = math.tanh %12 : vector<16x64xf32>
    %cst_7 = arith.constant 1.000000e+00 : f32
    %14 = vector.broadcast %cst_7 : f32 to vector<16x64xf32>
    %15 = arith.addf %14, %13 : vector<16x64xf32>
    %cst_8 = arith.constant 5.000000e-01 : f32
    %16 = vector.broadcast %cst_8 : f32 to vector<16x64xf32>
    %17 = arith.mulf %16, %15 : vector<16x64xf32>
    %18 = arith.mulf %5, %17 : vector<16x64xf32>
    %19 = arith.truncf %18 : vector<16x64xf32> to vector<16x64xbf16>
    %c0_9 = arith.constant 0 : index
    %c0_10 = arith.constant 0 : index
    %20 = vector.load %arg4[%c0_9, %c0_10] : memref<64x32xbf16, #tpu.memory_space<vmem>>, vector<64x32xbf16>
    %cst_11 = arith.constant dense<0.000000e+00> : vector<16x32xf32>
    %21 = tpu.matmul %19, %20, %cst_11 {dimension_numbers = #tpu.dot_dimension_numbers<[1], [0], [0], [1], [0, 0, 1, 1], [], []>} : vector<16x64xbf16>, vector<64x32xbf16>, vector<16x32xf32> -> vector<16x32xf32>
    %c0_12 = arith.constant 0 : index
    %c0_13 = arith.constant 0 : index
    %22 = vector.load %arg5[%c0_12, %c0_13] : memref<1x32xf32, #tpu.memory_space<vmem>>, vector<1x32xf32>
    %23 = vector.broadcast %22 : vector<1x32xf32> to vector<16x32xf32>
    %24 = arith.addf %21, %23 : vector<16x32xf32>
    %25 = arith.extf %0 : vector<16x32xbf16> to vector<16x32xf32>
    %26 = arith.addf %24, %25 : vector<16x32xf32>
    %cst_14 = arith.constant dense<0.000000e+00> : vector<16xf32>
    %27 = vector.multi_reduction <add>, %26, %cst_14 [1] : vector<16x32xf32> to vector<16xf32>
    %28 = vector.shape_cast %27 : vector<16xf32> to vector<16x1xf32>
    %cst_15 = arith.constant 3.200000e+01 : f32
    %29 = vector.broadcast %cst_15 : f32 to vector<16x1xf32>
    %30 = arith.divf %28, %29 : vector<16x1xf32>
    %31 = vector.broadcast %30 : vector<16x1xf32> to vector<16x32xf32>
    %32 = arith.subf %26, %31 : vector<16x32xf32>
    %33 = arith.mulf %32, %32 : vector<16x32xf32>
    %cst_16 = arith.constant dense<0.000000e+00> : vector<16xf32>
    %34 = vector.multi_reduction <add>, %33, %cst_16 [1] : vector<16x32xf32> to vector<16xf32>
    %35 = vector.shape_cast %34 : vector<16xf32> to vector<16x1xf32>
    %cst_17 = arith.constant 3.200000e+01 : f32
    %36 = vector.broadcast %cst_17 : f32 to vector<16x1xf32>
    %37 = arith.divf %35, %36 : vector<16x1xf32>
    %38 = vector.broadcast %30 : vector<16x1xf32> to vector<16x32xf32>
    %39 = arith.subf %26, %38 : vector<16x32xf32>
    %cst_18 = arith.constant 9.99999996E-13 : f32
    %40 = vector.broadcast %cst_18 : f32 to vector<16x1xf32>
    %41 = arith.addf %37, %40 : vector<16x1xf32>
    %42 = math.rsqrt %41 : vector<16x1xf32>
    %43 = vector.broadcast %42 : vector<16x1xf32> to vector<16x32xf32>
    %44 = arith.mulf %39, %43 : vector<16x32xf32>
    %c0_19 = arith.constant 0 : index
    %c0_20 = arith.constant 0 : index
    %45 = vector.load %arg6[%c0_19, %c0_20] : memref<1x32xf32, #tpu.memory_space<vmem>>, vector<1x32xf32>
    %46 = vector.broadcast %45 : vector<1x32xf32> to vector<16x32xf32>
    %47 = arith.mulf %44, %46 : vector<16x32xf32>
    %c0_21 = arith.constant 0 : index
    %c0_22 = arith.constant 0 : index
    %48 = vector.load %arg7[%c0_21, %c0_22] : memref<1x32xf32, #tpu.memory_space<vmem>>, vector<1x32xf32>
    %49 = vector.broadcast %48 : vector<1x32xf32> to vector<16x32xf32>
    %50 = arith.addf %47, %49 : vector<16x32xf32>
    %51 = arith.truncf %50 : vector<16x32xf32> to vector<16x32xbf16>
    %c0_23 = arith.constant 0 : index
    %c0_24 = arith.constant 0 : index
    %52 = vector.load %arg8[%c0_23, %c0_24] : memref<16x32xbf16, #tpu.memory_space<vmem>>, vector<16x32xbf16>
    tpu.vector_store %arg8[%c0_23, %c0_24], %51 {strides = array<i32>} : memref<16x32xbf16, #tpu.memory_space<vmem>>, vector<16x32xbf16>,
    return
  }
  func.func @transform_0(%arg0: i32) -> (i32, i32) {
    %c0_i32 = arith.constant 0 : i32
    %c0_i32_0 = arith.constant 0 : i32
    return %arg0, %c0_i32 : i32, i32
  }
  func.func @transform_1(%arg0: i32) -> (i32, i32) {
    %c0_i32 = arith.constant 0 : i32
    %c0_i32_0 = arith.constant 0 : i32
    %c0_i32_1 = arith.constant 0 : i32
    return %c0_i32, %c0_i32_0 : i32, i32
  }
  func.func @transform_2(%arg0: i32) -> (i32, i32) {
    %c0_i32 = arith.constant 0 : i32
    %c0_i32_0 = arith.constant 0 : i32
    %c0_i32_1 = arith.constant 0 : i32
    return %c0_i32, %c0_i32_0 : i32, i32
  }
  func.func @transform_3(%arg0: i32) -> (i32, i32) {
    %c0_i32 = arith.constant 0 : i32
    %c0_i32_0 = arith.constant 0 : i32
    %c0_i32_1 = arith.constant 0 : i32
    return %c0_i32, %c0_i32_0 : i32, i32
  }
  func.func @transform_4(%arg0: i32) -> (i32, i32) {
    %c0_i32 = arith.constant 0 : i32
    %c0_i32_0 = arith.constant 0 : i32
    %c0_i32_1 = arith.constant 0 : i32
    return %c0_i32, %c0_i32_0 : i32, i32
  }
  func.func @transform_5(%arg0: i32) -> (i32, i32) {
    %c0_i32 = arith.constant 0 : i32
    %c0_i32_0 = arith.constant 0 : i32
    %c0_i32_1 = arith.constant 0 : i32
    return %c0_i32, %c0_i32_0 : i32, i32
  }
  func.func @transform_6(%arg0: i32) -> (i32, i32) {
    %c0_i32 = arith.constant 0 : i32
    %c0_i32_0 = arith.constant 0 : i32
    %c0_i32_1 = arith.constant 0 : i32
    return %c0_i32, %c0_i32_0 : i32, i32
  }
  func.func @transform_7(%arg0: i32) -> (i32, i32) {
    %c0_i32 = arith.constant 0 : i32
    %c0_i32_0 = arith.constant 0 : i32
    return %arg0, %c0_i32 : i32, i32
  }
}

module attributes {stable_mosaic.version = 11 : i64} {
  func.func @_pooler_cls_kernel(%arg0: memref<2x32xbf16, #tpu.memory_space<vmem>>, %arg1: memref<32x32xbf16, #tpu.memory_space<vmem>>, %arg2: memref<1x32xf32, #tpu.memory_space<vmem>>, %arg3: memref<32x128xbf16, #tpu.memory_space<vmem>>, %arg4: memref<1x128xf32, #tpu.memory_space<vmem>>, %arg5: memref<2x128xf32, #tpu.memory_space<vmem>>) attributes {dimension_semantics = [], scalar_prefetch = 0 : i64, scratch_operands = 0 : i64, tpu.core_type = #tpu.core_type<tc>} {
    %c0 = arith.constant 0 : index
    %c0_0 = arith.constant 0 : index
    %0 = vector.load %arg0[%c0, %c0_0] : memref<2x32xbf16, #tpu.memory_space<vmem>>, vector<2x32xbf16>
    %c0_1 = arith.constant 0 : index
    %c0_2 = arith.constant 0 : index
    %1 = vector.load %arg1[%c0_1, %c0_2] : memref<32x32xbf16, #tpu.memory_space<vmem>>, vector<32x32xbf16>
    %cst = arith.constant dense<0.000000e+00> : vector<2x32xf32>
    %2 = tpu.matmul %0, %1, %cst {dimension_numbers = #tpu.dot_dimension_numbers<[1], [0], [0], [1], [0, 0, 1, 1], [], []>} : vector<2x32xbf16>, vector<32x32xbf16>, vector<2x32xf32> -> vector<2x32xf32>
    %c0_3 = arith.constant 0 : index
    %c0_4 = arith.constant 0 : index
    %3 = vector.load %arg2[%c0_3, %c0_4] : memref<1x32xf32, #tpu.memory_space<vmem>>, vector<1x32xf32>
    %4 = vector.broadcast %3 : vector<1x32xf32> to vector<2x32xf32>
    %5 = arith.addf %2, %4 : vector<2x32xf32>
    %6 = math.tanh %5 : vector<2x32xf32>
    %7 = arith.truncf %6 : vector<2x32xf32> to vector<2x32xbf16>
    %c0_5 = arith.constant 0 : index
    %c0_6 = arith.constant 0 : index
    %8 = vector.load %arg3[%c0_5, %c0_6] : memref<32x128xbf16, #tpu.memory_space<vmem>>, vector<32x128xbf16>
    %cst_7 = arith.constant dense<0.000000e+00> : vector<2x128xf32>
    %9 = tpu.matmul %7, %8, %cst_7 {dimension_numbers = #tpu.dot_dimension_numbers<[1], [0], [0], [1], [0, 0, 1, 1], [], []>} : vector<2x32xbf16>, vector<32x128xbf16>, vector<2x128xf32> -> vector<2x128xf32>
    %c0_8 = arith.constant 0 : index
    %c0_9 = arith.constant 0 : index
    %10 = vector.load %arg4[%c0_8, %c0_9] : memref<1x128xf32, #tpu.memory_space<vmem>>, vector<1x128xf32>
    %11 = vector.broadcast %10 : vector<1x128xf32> to vector<2x128xf32>
    %12 = arith.addf %9, %11 : vector<2x128xf32>
    %c0_10 = arith.constant 0 : index
    %c0_11 = arith.constant 0 : index
    %13 = vector.load %arg5[%c0_10, %c0_11] : memref<2x128xf32, #tpu.memory_space<vmem>>, vector<2x128xf32>
    tpu.vector_store %arg5[%c0_10, %c0_11], %12 {strides = array<i32>} : memref<2x128xf32, #tpu.memory_space<vmem>>, vector<2x128xf32>,
    return
  }
}

</mosaic_0001>

<llo_original>
// kernel: bert_class_forward.9
$region0: #{bert_class_forward.9}
  #allocation0 [shape = 'u32[]', space=smem, size = 0x4, offset = 0x4, fixed_abs, tag = 'smem constant byte address 0x4 - core index']
  #allocation1 [shape = 'u32[144,128]{1,0:T(1,128)}', space=vmem, size = 0x12000, scoped, tag = 'internal scratch']
  #allocation2 [shape = 'f32[16,96]{1,0:T(8,128)}', space=vmem, size = 0x2000, scoped, tag = 'scratch operand']
  %s0 = inlined_call_operand.vmem [shape: bf16[16,32], index: 0, kind: input, shape index: {}]
  %s1 = inlined_call_operand.vmem [shape: bf16[32,96], index: 1, kind: input, shape index: {}]
  %s2 = inlined_call_operand.vmem [shape: f32[1,96], index: 2, kind: input, shape index: {}]
  %s3 = inlined_call_operand.vmem [shape: bf16[16,96], index: 3, kind: output, shape index: {}]
  %s4 = sld [smem:[#allocation0]]
  $region30: #{bert_class_forward.9} parent=0
    _
  %s6 = ssub.s32 1, %s4
  %s7 = scalar_select 0, %s6, %s4
  // Predicated region
  $region2: #{bert_class_forward.9} parent=0 // pred_check
    _
  $region3: #{bert_class_forward.9} parent=0 // pred_check_branch
    %9 = sbr.rel (0) target = $region5
  $region4: #{bert_class_forward.9} parent=0 // pred_region
    _
  $region5: #{bert_class_forward.9} parent=0 // pred_fallthru
    _
  // Predicated region
  $region6: #{bert_class_forward.9} parent=0 // pred_check
    _
  $region7: #{bert_class_forward.9} parent=0 // pred_check_branch
    %11 = sbr.rel (0) target = $region9
  $region8: #{bert_class_forward.9} parent=0 // pred_region
    _
  $region9: #{bert_class_forward.9} parent=0 // pred_fallthru
    _
  // Predicated region
  $region10: #{bert_class_forward.9} parent=0 // pred_check
    _
  $region11: #{bert_class_forward.9} parent=0 // pred_check_branch
    %13 = sbr.rel (0) target = $region13
  $region12: #{bert_class_forward.9} parent=0 // pred_region
    _
  $region13: #{bert_class_forward.9} parent=0 // pred_fallthru
    _
  %p15 = scmp.eq.s32.totalorder 0, 0
  // Predicated region
  $region14: #{bert_class_forward.9} parent=0 // pred_check
    %p16 = pneg %p15
  $region15: #{bert_class_forward.9} parent=0 // pred_check_branch
    %18 = sbr.rel (%p16) target = $region17
  $region16: #{bert_class_forward.9} parent=0 // pred_region
    %vm19 = vcmask 785408
    %20 = vst.msk [vmem:[#allocation2] sm:$0xff] %vm19, 0.0
    %21 = vst.msk [vmem:[#allocation2 + $0x8] sm:$0xff] %vm19, 0.0
  $region17: #{bert_class_forward.9} parent=0 // pred_fallthru
    _
  %v22 = vld [vmem:[#allocation2] sm:$0xff]
  %v23 = vld [vmem:[#allocation2 + $0x8] sm:$0xff]
  %v24 = vld [vmem:[%s0] sm:$0xf]
  %v25 = vld [vmem:[%s0 + $0x4] sm:$0xf]
  %v26 = vld [vmem:[%s1] sm:$0xf]
  %v27 = vld [vmem:[%s1 + $0x4] sm:$0xf]
  %v28 = vld [vmem:[%s1 + $0x8] sm:$0xf]
  %v29 = vld [vmem:[%s1 + $0xc] sm:$0xf]
  %v32 = vunpack.c.l.b16 %v24
  %v33 = vunpack.c.l.b16 %v25
  %v34 = vpack.c.b16 %v33, %v32
  %v39 = vunpack.c.l.b16 %v26
  %v40 = vunpack.c.l.b16 %v27
  %v41 = vunpack.c.l.b16 %v28
  %v42 = vunpack.c.l.b16 %v29
  %v43 = vpack.c.b16 %v40, %v39
  %v44 = vpack.c.b16 %v42, %v41
  %vm47 = vcmask 261120
  %v49 = vsel %vm47, %v34, 0
  %51 = vmatprep.subr.bf16.mxu0 0
  %52 = vmatpush1.bf16.msra.mxu0 0
  %53 = vmatprep.subr.bf16.mxu0 0
  %54 = vmatpush1.bf16.msra.mxu0 0
  %55 = vmatprep.subr.bf16.mxu0 0
  %56 = vmatpush1.bf16.msra.mxu0 0
  %57 = vmatprep.subr.bf16.mxu0 0
  %58 = vmatpush1.bf16.msra.mxu0 0
  %59 = vmatprep.subr.bf16.mxu0 0
  %60 = vmatpush1.bf16.msra.mxu0 0
  %61 = vmatprep.subr.bf16.mxu0 0
  %62 = vmatpush1.bf16.msra.mxu0 0
  %63 = vmatprep.subr.bf16.mxu0 0
  %64 = vmatpush1.bf16.msra.mxu0 %v44
  %65 = vmatprep.subr.bf16.mxu0 0
  %66 = vmatpush1.bf16.msra.mxu0 %v43
  %67 = vmatprep.subr.bf16.mxu0 0
  %68 = vmatpush2.bf16.msra.mxu0 0
  %69 = vmatprep.subr.bf16.mxu0 0
  %70 = vmatpush2.bf16.msra.mxu0 0
  %71 = vmatprep.subr.bf16.mxu0 0
  %72 = vmatpush2.bf16.msra.mxu0 0
  %73 = vmatprep.subr.bf16.mxu0 0
  %74 = vmatpush2.bf16.msra.mxu0 0
  %75 = vmatprep.subr.bf16.mxu0 0
  %76 = vmatpush2.bf16.msra.mxu0 0
  %77 = vmatprep.subr.bf16.mxu0 0
  %78 = vmatpush2.bf16.msra.mxu0 0
  %79 = vmatprep.subr.bf16.mxu0 0
  %80 = vmatpush2.bf16.msra.mxu0 0
  %81 = vmatprep.subr.bf16.mxu0 0
  %82 = vmatpush2.bf16.msra.mxu0 0
  %83 = vmatprep.mubr.bf16.mxu0 0
  %84 = vmatmul.mubr.bf16.gmra.mxu0 %v49
  %v85 = vpop.f32.mrf.mxu0
  %v86 = vadd.f32 0.0, %v85
  %v87 = vpop.f32.mrf.mxu0
  %v88 = vpop.f32.mrf.mxu0
  %v89 = vadd.f32 0.0, %v88
  %v90 = vpop.f32.mrf.mxu0
  %91 = vdwg.mxu0
  %v92 = vadd.f32 %v22, %v86
  %v93 = vadd.f32 %v23, %v89
  %vm94 = vcmask 785408
  %95 = vst.msk [vmem:[#allocation2] sm:$0xff] %vm94, %v92
  %96 = vst.msk [vmem:[#allocation2 + $0x8] sm:$0xff] %vm94, %v93
  // Predicated region
  $region18: #{bert_class_forward.9} parent=0 // pred_check
    %p97 = pneg %p15
  $region19: #{bert_class_forward.9} parent=0 // pred_check_branch
    %99 = sbr.rel (%p97) target = $region21
  $region20: #{bert_class_forward.9} parent=0 // pred_region
    %v100 = vld [vmem:[#allocation2] sm:$0xff]
    %v101 = vld [vmem:[#allocation2 + $0x8] sm:$0xff]
    %v102 = vld [vmem:[%s2] sm:$0x1]
    %v104 = vlaneseq
    %v105 = vshrl.u32 %v104, 7
    %v106 = vsub.s32 0, %v105
    %v107 = vrot.slane %v102, %v106
    %v109 = vadd.f32 %v100, %v107
    %v110 = vadd.f32 %v101, %v107
    %v111 = vpack.c.bf16 %v110, %v109
    %v113 = vunpack.c.l.b16 %v111
    %v114 = vunpack.c.h.b16 %v111
    %v115 = vpack.c.b16 %v113, %v113
    %v116 = vpack.c.b16 %v114, %v114
    %vm119 = vcmask 781312
    %120 = vst.msk [vmem:[%s3] sm:$0xf] %vm119, %v115
    %121 = vst.msk [vmem:[%s3 + $0x4] sm:$0xf] %vm119, %v116
  $region21: #{bert_class_forward.9} parent=0 // pred_fallthru
    _
  // Predicated region
  $region22: #{bert_class_forward.9} parent=0 // pred_check
    _
  $region23: #{bert_class_forward.9} parent=0 // pred_check_branch
    %123 = sbr.rel (0) target = $region25
  $region24: #{bert_class_forward.9} parent=0 // pred_region
    _
  $region25: #{bert_class_forward.9} parent=0 // pred_fallthru
    _
  // Predicated region
  $region26: #{bert_class_forward.9} parent=0 // pred_check
    _
  $region27: #{bert_class_forward.9} parent=0 // pred_check_branch
    %125 = sbr.rel (0) target = $region29
  $region28: #{bert_class_forward.9} parent=0 // pred_region
    _
  $region29: #{bert_class_forward.9} parent=0 // pred_fallthru
    _

// kernel: bert_class_forward.8
$region0: #{bert_class_forward.8}
  #allocation0 [shape = 'u32[]', space=smem, size = 0x4, offset = 0x4, fixed_abs, tag = 'smem constant byte address 0x4 - core index']
  #allocation1 [shape = 'u32[144,128]{1,0:T(1,128)}', space=vmem, size = 0x12000, scoped, tag = 'internal scratch']
  %s0 = inlined_call_operand.vmem [shape: bf16[16,32], index: 0, kind: input, shape index: {}]
  %s1 = inlined_call_operand.vmem [shape: f32[1,32], index: 1, kind: input, shape index: {}]
  %s2 = inlined_call_operand.vmem [shape: f32[1,32], index: 2, kind: input, shape index: {}]
  %s3 = inlined_call_operand.vmem [shape: bf16[16,32], index: 3, kind: output, shape index: {}]
  %s4 = sld [smem:[#allocation0]]
  $region22: #{bert_class_forward.8} parent=0
    _
  %s6 = ssub.s32 1, %s4
  %s7 = scalar_select 0, %s6, %s4
  // Predicated region
  $region2: #{bert_class_forward.8} parent=0 // pred_check
    _
  $region3: #{bert_class_forward.8} parent=0 // pred_check_branch
    %9 = sbr.rel (0) target = $region5
  $region4: #{bert_class_forward.8} parent=0 // pred_region
    _
  $region5: #{bert_class_forward.8} parent=0 // pred_fallthru
    _
  // Predicated region
  $region6: #{bert_class_forward.8} parent=0 // pred_check
    _
  $region7: #{bert_class_forward.8} parent=0 // pred_check_branch
    %11 = sbr.rel (0) target = $region9
  $region8: #{bert_class_forward.8} parent=0 // pred_region
    _
  $region9: #{bert_class_forward.8} parent=0 // pred_fallthru
    _
  // Predicated region
  $region10: #{bert_class_forward.8} parent=0 // pred_check
    _
  $region11: #{bert_class_forward.8} parent=0 // pred_check_branch
    %13 = sbr.rel (0) target = $region13
  $region12: #{bert_class_forward.8} parent=0 // pred_region
    _
  $region13: #{bert_class_forward.8} parent=0 // pred_fallthru
    _
  %v14 = vld [vmem:[%s0] sm:$0xf]
  %v15 = vld [vmem:[%s0 + $0x4] sm:$0xf]
  %v16 = vunpack.c.l.bf16 %v14
  %v17 = vunpack.c.l.bf16 %v15
  %vm18 = vcmask 261120
  %v19 = vsel %vm18, %v16, 0.0
  %20 = vadd.xlane.f32.xlu0 %v19
  %v21 = vpop.xlane.xlu0 %20
  %v22 = vsel %vm18, %v17, 0.0
  %23 = vadd.xlane.f32.xlu0 %v22
  %v24 = vpop.xlane.xlu0 %23
  %v25 = vrcp.pop 32.0
  %v26 = vmul.f32 %v21, %v25
  %v27 = vmul.f32 %v24, %v25
  %v28 = vsub.f32 %v16, %v26
  %v29 = vsub.f32 %v17, %v27
  %v30 = vmul.f32 %v28, %v28
  %v31 = vmul.f32 %v29, %v29
  %v32 = vsel %vm18, %v30, 0.0
  %33 = vadd.xlane.f32.xlu0 %v32
  %v34 = vpop.xlane.xlu0 %33
  %v35 = vsel %vm18, %v31, 0.0
  %36 = vadd.xlane.f32.xlu0 %v35
  %v37 = vpop.xlane.xlu0 %36
  %v38 = vmul.f32 %v34, %v25
  %v39 = vmul.f32 %v37, %v25
  %v40 = vadd.f32 %v38, 1e-12
  %v41 = vadd.f32 %v39, 1e-12
  %v42 = vrsqrt.pop %v40
  %v43 = vrsqrt.pop %v41
  %v44 = vmul.f32 %v28, %v42
  %v45 = vmul.f32 %v29, %v43
  %v46 = vld [vmem:[%s1] sm:$0x1]
  %v48 = vlaneseq
  %v49 = vshrl.u32 %v48, 7
  %v50 = vsub.s32 0, %v49
  %v51 = vrot.slane %v46, %v50
  %v53 = vmul.f32 %v44, %v51
  %v54 = vmul.f32 %v45, %v51
  %v55 = vld [vmem:[%s2] sm:$0x1]
  %v57 = vlaneseq
  %v58 = vshrl.u32 %v57, 7
  %v59 = vsub.s32 0, %v58
  %v60 = vrot.slane %v55, %v59
  %v62 = vadd.f32 %v53, %v60
  %v63 = vadd.f32 %v54, %v60
  %v64 = vpack.c.bf16 %v63, %v62
  %v66 = vunpack.c.l.b16 %v64
  %v67 = vunpack.c.h.b16 %v64
  %v68 = vpack.c.b16 %v66, %v66
  %v69 = vpack.c.b16 %v67, %v67
  %vm72 = vcmask 257024
  %73 = vst.msk [vmem:[%s3] sm:$0xf] %vm72, %v68
  %74 = vst.msk [vmem:[%s3 + $0x4] sm:$0xf] %vm72, %v69
  // Predicated region
  $region14: #{bert_class_forward.8} parent=0 // pred_check
    _
  $region15: #{bert_class_forward.8} parent=0 // pred_check_branch
    %76 = sbr.rel (0) target = $region17
  $region16: #{bert_class_forward.8} parent=0 // pred_region
    _
  $region17: #{bert_class_forward.8} parent=0 // pred_fallthru
    _
  // Predicated region
  $region18: #{bert_class_forward.8} parent=0 // pred_check
    _
  $region19: #{bert_class_forward.8} parent=0 // pred_check_branch
    %78 = sbr.rel (0) target = $region21
  $region20: #{bert_class_forward.8} parent=0 // pred_region
    _
  $region21: #{bert_class_forward.8} parent=0 // pred_fallthru
    _

// kernel: bert_class_forward.11
$region0: #{bert_class_forward.11}
  #allocation0 [shape = 'u32[]', space=smem, size = 0x4, offset = 0x4, fixed_abs, tag = 'smem constant byte address 0x4 - core index']
  #allocation1 [shape = 'u32[144,128]{1,0:T(1,128)}', space=vmem, size = 0x12000, scoped, tag = 'internal scratch']
  %s0 = inlined_call_operand.vmem [shape: bf16[16,32], index: 0, kind: input, shape index: {}]
  %s1 = inlined_call_operand.vmem [shape: bf16[32,64], index: 1, kind: input, shape index: {}]
  %s2 = inlined_call_operand.vmem [shape: f32[1,64], index: 2, kind: input, shape index: {}]
  %s3 = inlined_call_operand.vmem [shape: bf16[64,32], index: 3, kind: input, shape index: {}]
  %s4 = inlined_call_operand.vmem [shape: f32[1,32], index: 4, kind: input, shape index: {}]
  %s5 = inlined_call_operand.vmem [shape: f32[1,32], index: 5, kind: input, shape index: {}]
  %s6 = inlined_call_operand.vmem [shape: f32[1,32], index: 6, kind: input, shape index: {}]
  %s7 = inlined_call_operand.vmem [shape: bf16[16,32], index: 7, kind: output, shape index: {}]
  %s8 = sld [smem:[#allocation0]]
  $region38: #{bert_class_forward.11} parent=0
    _
  %s10 = ssub.s32 1, %s8
  %s11 = scalar_select 0, %s10, %s8
  // Predicated region
  $region2: #{bert_class_forward.11} parent=0 // pred_check
    _
  $region3: #{bert_class_forward.11} parent=0 // pred_check_branch
    %13 = sbr.rel (0) target = $region5
  $region4: #{bert_class_forward.11} parent=0 // pred_region
    _
  $region5: #{bert_class_forward.11} parent=0 // pred_fallthru
    _
  // Predicated region
  $region6: #{bert_class_forward.11} parent=0 // pred_check
    _
  $region7: #{bert_class_forward.11} parent=0 // pred_check_branch
    %15 = sbr.rel (0) target = $region9
  $region8: #{bert_class_forward.11} parent=0 // pred_region
    _
  $region9: #{bert_class_forward.11} parent=0 // pred_fallthru
    _
  // Predicated region
  $region10: #{bert_class_forward.11} parent=0 // pred_check
    _
  $region11: #{bert_class_forward.11} parent=0 // pred_check_branch
    %17 = sbr.rel (0) target = $region13
  $region12: #{bert_class_forward.11} parent=0 // pred_region
    _
  $region13: #{bert_class_forward.11} parent=0 // pred_fallthru
    _
  // Predicated region
  $region14: #{bert_class_forward.11} parent=0 // pred_check
    _
  $region15: #{bert_class_forward.11} parent=0 // pred_check_branch
    %19 = sbr.rel (0) target = $region17
  $region16: #{bert_class_forward.11} parent=0 // pred_region
    _
  $region17: #{bert_class_forward.11} parent=0 // pred_fallthru
    _
  // Predicated region
  $region18: #{bert_class_forward.11} parent=0 // pred_check
    _
  $region19: #{bert_class_forward.11} parent=0 // pred_check_branch
    %21 = sbr.rel (0) target = $region21
  $region20: #{bert_class_forward.11} parent=0 // pred_region
    _
  $region21: #{bert_class_forward.11} parent=0 // pred_fallthru
    _
  // Predicated region
  $region22: #{bert_class_forward.11} parent=0 // pred_check
    _
  $region23: #{bert_class_forward.11} parent=0 // pred_check_branch
    %23 = sbr.rel (0) target = $region25
  $region24: #{bert_class_forward.11} parent=0 // pred_region
    _
  $region25: #{bert_class_forward.11} parent=0 // pred_fallthru
    _
  // Predicated region
  $region26: #{bert_class_forward.11} parent=0 // pred_check
    _
  $region27: #{bert_class_forward.11} parent=0 // pred_check_branch
    %25 = sbr.rel (0) target = $region29
  $region28: #{bert_class_forward.11} parent=0 // pred_region
    _
  $region29: #{bert_class_forward.11} parent=0 // pred_fallthru
    _
  %v27 = vld [vmem:[%s0] sm:$0xf]
  %v28 = vld [vmem:[%s0 + $0x4] sm:$0xf]
  %v29 = vld [vmem:[%s1] sm:$0xf]
  %v30 = vld [vmem:[%s1 + $0x4] sm:$0xf]
  %v31 = vld [vmem:[%s1 + $0x8] sm:$0xf]
  %v32 = vld [vmem:[%s1 + $0xc] sm:$0xf]
  %v33 = vld [vmem:[%s2] sm:$0x1]
  %v35 = vlaneseq
  %v36 = vshrl.u32 %v35, 7
  %v37 = vsub.s32 0, %v36
  %v38 = vrot.slane %v33, %v37
  %v42 = vunpack.c.l.b16 %v27
  %v43 = vunpack.c.l.b16 %v28
  %v44 = vpack.c.b16 %v43, %v42
  %v49 = vunpack.c.l.b16 %v29
  %v50 = vunpack.c.l.b16 %v30
  %v51 = vunpack.c.l.b16 %v31
  %v52 = vunpack.c.l.b16 %v32
  %v53 = vpack.c.b16 %v50, %v49
  %v54 = vpack.c.b16 %v52, %v51
  %vm57 = vcmask 261120
  %v59 = vsel %vm57, %v44, 0
  %61 = vmatprep.subr.bf16.mxu0 0
  %62 = vmatpush1.bf16.msra.mxu0 0
  %63 = vmatprep.subr.bf16.mxu0 0
  %64 = vmatpush1.bf16.msra.mxu0 0
  %65 = vmatprep.subr.bf16.mxu0 0
  %66 = vmatpush1.bf16.msra.mxu0 0
  %67 = vmatprep.subr.bf16.mxu0 0
  %68 = vmatpush1.bf16.msra.mxu0 0
  %69 = vmatprep.subr.bf16.mxu0 0
  %70 = vmatpush1.bf16.msra.mxu0 0
  %71 = vmatprep.subr.bf16.mxu0 0
  %72 = vmatpush1.bf16.msra.mxu0 0
  %73 = vmatprep.subr.bf16.mxu0 0
  %74 = vmatpush1.bf16.msra.mxu0 %v54
  %75 = vmatprep.subr.bf16.mxu0 0
  %76 = vmatpush1.bf16.msra.mxu0 %v53
  %77 = vmatprep.subr.bf16.mxu0 0
  %78 = vmatpush2.bf16.msra.mxu0 0
  %79 = vmatprep.subr.bf16.mxu0 0
  %80 = vmatpush2.bf16.msra.mxu0 0
  %81 = vmatprep.subr.bf16.mxu0 0
  %82 = vmatpush2.bf16.msra.mxu0 0
  %83 = vmatprep.subr.bf16.mxu0 0
  %84 = vmatpush2.bf16.msra.mxu0 0
  %85 = vmatprep.subr.bf16.mxu0 0
  %86 = vmatpush2.bf16.msra.mxu0 0
  %87 = vmatprep.subr.bf16.mxu0 0
  %88 = vmatpush2.bf16.msra.mxu0 0
  %89 = vmatprep.subr.bf16.mxu0 0
  %90 = vmatpush2.bf16.msra.mxu0 0
  %91 = vmatprep.subr.bf16.mxu0 0
  %92 = vmatpush2.bf16.msra.mxu0 0
  %93 = vmatprep.mubr.bf16.mxu0 0
  %94 = vmatmul.mubr.bf16.gmra.mxu0 %v59
  %v95 = vpop.f32.mrf.mxu0
  %v96 = vadd.f32 %v38, %v95
  %v97 = vpop.f32.mrf.mxu0
  %v98 = vpop.f32.mrf.mxu0
  %v99 = vadd.f32 %v38, %v98
  %v100 = vpop.f32.mrf.mxu0
  %101 = vdwg.mxu0
  %v102 = vmul.f32 %v96, %v96
  %v103 = vmul.f32 %v99, %v99
  %v104 = vmul.f32 %v96, %v102
  %v105 = vmul.f32 %v99, %v103
  %v106 = vmul.f32 %v104, 0.044715
  %v107 = vmul.f32 %v105, 0.044715
  %v108 = vadd.f32 %v96, %v106
  %v109 = vadd.f32 %v99, %v107
  %v110 = vmul.f32 %v108, 0.7978846
  %v111 = vmul.f32 %v109, 0.7978846
  %v112 = vtanh.pop %v110
  %v113 = vtanh.pop %v111
  %v114 = vadd.f32 %v112, 1.0
  %v115 = vadd.f32 %v113, 1.0
  %v116 = vmul.f32 %v114, 0.5
  %v117 = vmul.f32 %v115, 0.5
  %v118 = vmul.f32 %v96, %v116
  %v119 = vmul.f32 %v99, %v117
  %v120 = vpack.c.bf16 %v119, %v118
  %v121 = vld [vmem:[%s3] sm:$0xf]
  %v122 = vld [vmem:[%s3 + $0x4] sm:$0xf]
  %v123 = vld [vmem:[%s3 + $0x8] sm:$0xf]
  %v124 = vld [vmem:[%s3 + $0xc] sm:$0xf]
  %v125 = vld [vmem:[%s3 + $0x10] sm:$0xf]
  %v126 = vld [vmem:[%s3 + $0x14] sm:$0xf]
  %v127 = vld [vmem:[%s3 + $0x18] sm:$0xf]
  %v128 = vld [vmem:[%s3 + $0x1c] sm:$0xf]
  %v129 = vld [vmem:[%s4] sm:$0x1]
  %v131 = vlaneseq
  %v132 = vshrl.u32 %v131, 7
  %v133 = vsub.s32 0, %v132
  %v134 = vrot.slane %v129, %v133
  %v144 = vunpack.c.l.b16 %v121
  %v145 = vunpack.c.l.b16 %v122
  %v146 = vunpack.c.l.b16 %v123
  %v147 = vunpack.c.l.b16 %v124
  %v148 = vunpack.c.l.b16 %v125
  %v149 = vunpack.c.l.b16 %v126
  %v150 = vunpack.c.l.b16 %v127
  %v151 = vunpack.c.l.b16 %v128
  %v152 = vpack.c.b16 %v145, %v144
  %v153 = vpack.c.b16 %v147, %v146
  %v154 = vpack.c.b16 %v149, %v148
  %v155 = vpack.c.b16 %v151, %v150
  %vm160 = vcmask 523264
  %v162 = vsel %vm160, %v120, 0
  %164 = vmatprep.subr.bf16.mxu0 0
  %165 = vmatpush1.bf16.msra.mxu0 0
  %166 = vmatprep.subr.bf16.mxu0 0
  %167 = vmatpush1.bf16.msra.mxu0 0
  %168 = vmatprep.subr.bf16.mxu0 0
  %169 = vmatpush1.bf16.msra.mxu0 0
  %170 = vmatprep.subr.bf16.mxu0 0
  %171 = vmatpush1.bf16.msra.mxu0 0
  %172 = vmatprep.subr.bf16.mxu0 0
  %173 = vmatpush1.bf16.msra.mxu0 %v155
  %174 = vmatprep.subr.bf16.mxu0 0
  %175 = vmatpush1.bf16.msra.mxu0 %v154
  %176 = vmatprep.subr.bf16.mxu0 0
  %177 = vmatpush1.bf16.msra.mxu0 %v153
  %178 = vmatprep.subr.bf16.mxu0 0
  %179 = vmatpush1.bf16.msra.mxu0 %v152
  %180 = vmatprep.subr.bf16.mxu0 0
  %181 = vmatpush2.bf16.msra.mxu0 0
  %182 = vmatprep.subr.bf16.mxu0 0
  %183 = vmatpush2.bf16.msra.mxu0 0
  %184 = vmatprep.subr.bf16.mxu0 0
  %185 = vmatpush2.bf16.msra.mxu0 0
  %186 = vmatprep.subr.bf16.mxu0 0
  %187 = vmatpush2.bf16.msra.mxu0 0
  %188 = vmatprep.subr.bf16.mxu0 0
  %189 = vmatpush2.bf16.msra.mxu0 0
  %190 = vmatprep.subr.bf16.mxu0 0
  %191 = vmatpush2.bf16.msra.mxu0 0
  %192 = vmatprep.subr.bf16.mxu0 0
  %193 = vmatpush2.bf16.msra.mxu0 0
  %194 = vmatprep.subr.bf16.mxu0 0
  %195 = vmatpush2.bf16.msra.mxu0 0
  %196 = vmatprep.mubr.bf16.mxu0 0
  %197 = vmatmul.mubr.bf16.gmra.mxu0 %v162
  %v198 = vpop.f32.mrf.mxu0
  %v199 = vadd.f32 %v134, %v198
  %v200 = vpop.f32.mrf.mxu0
  %v201 = vpop.f32.mrf.mxu0
  %v202 = vadd.f32 %v134, %v201
  %v203 = vpop.f32.mrf.mxu0
  %204 = vdwg.mxu0
  %v205 = vunpack.c.l.bf16 %v27
  %v206 = vunpack.c.l.bf16 %v28
  %v207 = vadd.f32 %v199, %v205
  %v208 = vadd.f32 %v202, %v206
  %v209 = vsel %vm57, %v207, 0.0
  %210 = vadd.xlane.f32.xlu0 %v209
  %v211 = vpop.xlane.xlu0 %210
  %v212 = vsel %vm57, %v208, 0.0
  %213 = vadd.xlane.f32.xlu0 %v212
  %v214 = vpop.xlane.xlu0 %213
  %v215 = vrcp.pop 32.0
  %v216 = vmul.f32 %v211, %v215
  %v217 = vmul.f32 %v214, %v215
  %v218 = vsub.f32 %v207, %v216
  %v219 = vsub.f32 %v208, %v217
  %v220 = vmul.f32 %v218, %v218
  %v221 = vmul.f32 %v219, %v219
  %v222 = vsel %vm57, %v220, 0.0
  %223 = vadd.xlane.f32.xlu0 %v222
  %v224 = vpop.xlane.xlu0 %223
  %v225 = vsel %vm57, %v221, 0.0
  %226 = vadd.xlane.f32.xlu0 %v225
  %v227 = vpop.xlane.xlu0 %226
  %v228 = vmul.f32 %v224, %v215
  %v229 = vmul.f32 %v227, %v215
  %v230 = vadd.f32 %v228, 1e-12
  %v231 = vadd.f32 %v229, 1e-12
  %v232 = vrsqrt.pop %v230
  %v233 = vrsqrt.pop %v231
  %v234 = vmul.f32 %v218, %v232
  %v235 = vmul.f32 %v219, %v233
  %v236 = vld [vmem:[%s5] sm:$0x1]
  %v238 = vlaneseq
  %v239 = vshrl.u32 %v238, 7
  %v240 = vsub.s32 0, %v239
  %v241 = vrot.slane %v236, %v240
  %v243 = vmul.f32 %v234, %v241
  %v244 = vmul.f32 %v235, %v241
  %v245 = vld [vmem:[%s6] sm:$0x1]
  %v247 = vlaneseq
  %v248 = vshrl.u32 %v247, 7
  %v249 = vsub.s32 0, %v248
  %v250 = vrot.slane %v245, %v249
  %v252 = vadd.f32 %v243, %v250
  %v253 = vadd.f32 %v244, %v250
  %v254 = vpack.c.bf16 %v253, %v252
  %v256 = vunpack.c.l.b16 %v254
  %v257 = vunpack.c.h.b16 %v254
  %v258 = vpack.c.b16 %v256, %v256
  %v259 = vpack.c.b16 %v257, %v257
  %vm262 = vcmask 257024
  %263 = vst.msk [vmem:[%s7] sm:$0xf] %vm262, %v258
  %264 = vst.msk [vmem:[%s7 + $0x4] sm:$0xf] %vm262, %v259
  // Predicated region
  $region30: #{bert_class_forward.11} parent=0 // pred_check
    _
  $region31: #{bert_class_forward.11} parent=0 // pred_check_branch
    %266 = sbr.rel (0) target = $region33
  $region32: #{bert_class_forward.11} parent=0 // pred_region
    _
  $region33: #{bert_class_forward.11} parent=0 // pred_fallthru
    _
  // Predicated region
  $region34: #{bert_class_forward.11} parent=0 // pred_check
    _
  $region35: #{bert_class_forward.11} parent=0 // pred_check_branch
    %268 = sbr.rel (0) target = $region37
  $region36: #{bert_class_forward.11} parent=0 // pred_region
    _
  $region37: #{bert_class_forward.11} parent=0 // pred_fallthru
    _

// kernel: bert_class_forward.10
$region0: #{bert_class_forward.10}
  #allocation0 [shape = 'u32[]', space=smem, size = 0x4, offset = 0x4, fixed_abs, tag = 'smem constant byte address 0x4 - core index']
  #allocation1 [shape = 'u32[144,128]{1,0:T(1,128)}', space=vmem, size = 0x12000, scoped, tag = 'internal scratch']
  #allocation2 [shape = 'f32[8,32]{1,0:T(8,128)}', space=vmem, size = 0x1000, scoped, tag = 'scratch operand']
  %s0 = inlined_call_operand.vmem [shape: bf16[2,8,96], index: 0, kind: input, shape index: {}]
  %s1 = inlined_call_operand.vmem [shape: f32[2,1,8], index: 1, kind: input, shape index: {}]
  %s2 = inlined_call_operand.vmem [shape: bf16[2,8,32], index: 2, kind: input, shape index: {}]
  %s3 = inlined_call_operand.vmem [shape: bf16[32,32], index: 3, kind: input, shape index: {}]
  %s4 = inlined_call_operand.vmem [shape: f32[1,32], index: 4, kind: input, shape index: {}]
  %s5 = inlined_call_operand.vmem [shape: f32[1,32], index: 5, kind: input, shape index: {}]
  %s6 = inlined_call_operand.vmem [shape: f32[1,32], index: 6, kind: input, shape index: {}]
  %s7 = inlined_call_operand.vmem [shape: bf16[2,8,32], index: 7, kind: output, shape index: {}]
  %s8 = sld [smem:[#allocation0]]
  $region61: #{bert_class_forward.10} parent=0
    _
  %s10 = ssub.s32 1, %s8
  %s11 = scalar_select 0, %s10, %s8
  loop: start=0, step=1, limit=4
  $region2: #{bert_class_forward.10} parent=0 // loop_pre_header
    _
  $region3: #{bert_class_forward.10} parent=0 // loop_header
    %s13 = sphi 0, %s17
    %p14 = scmp.ge.s32.totalorder %s13, 4
    %s23 = sphi 0, %s25
    %s26 = sphi 0, %s23
    %s27 = sphi 0, %s26
    %s43 = sphi 0, %s27
    %s49 = sphi 0, %s51
    %s52 = sphi 0, %s49
    %s53 = sphi 0, %s52
    %s69 = sphi 0, %s53
    %s75 = sphi 0, %s77
    %s78 = sphi 0, %s75
    %s79 = sphi 0, %s78
    %s95 = sphi 0, %s79
    %s99 = sphi 0, %s99
    %s101 = sphi 0, %s99
    %s102 = sphi 0, %s101
    %s116 = sphi 0, %s102
    %s120 = sphi 0, %s120
    %s122 = sphi 0, %s120
    %s123 = sphi 0, %s122
    %s137 = sphi 0, %s123
    %s141 = sphi 0, %s141
    %s143 = sphi 0, %s141
    %s144 = sphi 0, %s143
    %s158 = sphi 0, %s144
    %s162 = sphi 0, %s162
    %s164 = sphi 0, %s162
    %s165 = sphi 0, %s164
    %s179 = sphi 0, %s165
    %s185 = sphi 0, %s187
    %s188 = sphi 0, %s185
    %s189 = sphi 0, %s188
    %s205 = sphi 0, %s189
  $region4: #{bert_class_forward.10} parent=0 // loop_header_branch
    %16 = sbr.rel (%p14) target = $region8
  $region5: #{bert_class_forward.10} parent=0 // loop_body
    %s18 = ssub.s32 %s13, 1
    %s19 = ssub.s32 %s13, 2
    %s20 = sadd.s32 %s13, 1
    %s21 = ssub.s32 %s13, %s20
    %p22 = scmp.eq.s32.totalorder %s21, 0
    %s24 = sadd.s32 %s23, 1
    %s25 = scalar_select %p22, %s23, %s24
    %p28 = pneg %p22
    %p29 = scmp.eq.s32.totalorder %s13, 1
    %p30 = por %p28, %p29
    %p31 = scmp.ne.s32.totalorder %s23, %s26
    %p32 = scmp.eq.s32.totalorder %s13, 0
    %p33 = por %p31, %p32
    %p34 = scmp.ne.s32.totalorder %s23, %s26
    %p35 = scmp.eq.s32.totalorder %s18, 1
    %p36 = por %p34, %p35
    %p37 = scmp.ne.s32.totalorder %s26, %s27
    %p38 = scmp.eq.s32.totalorder %s18, 0
    %p39 = por %p37, %p38
    %p40 = scmp.ne.s32.totalorder %s26, %s27
    %p41 = scmp.eq.s32.totalorder %s19, 1
    %p42 = por %p40, %p41
    %p44 = scmp.ne.s32.totalorder %s27, %s43
    %p45 = scmp.eq.s32.totalorder %s19, 0
    %p46 = por %p44, %p45
    %s47 = ssub.s32 %s13, %s20
    %p48 = scmp.eq.s32.totalorder %s47, 0
    %s50 = sadd.s32 %s49, 1
    %s51 = scalar_select %p48, %s49, %s50
    %p54 = pneg %p48
    %p55 = scmp.eq.s32.totalorder %s13, 1
    %p56 = por %p54, %p55
    %p57 = scmp.ne.s32.totalorder %s49, %s52
    %p58 = scmp.eq.s32.totalorder %s13, 0
    %p59 = por %p57, %p58
    %p60 = scmp.ne.s32.totalorder %s49, %s52
    %p61 = scmp.eq.s32.totalorder %s18, 1
    %p62 = por %p60, %p61
    %p63 = scmp.ne.s32.totalorder %s52, %s53
    %p64 = scmp.eq.s32.totalorder %s18, 0
    %p65 = por %p63, %p64
    %p66 = scmp.ne.s32.totalorder %s52, %s53
    %p67 = scmp.eq.s32.totalorder %s19, 1
    %p68 = por %p66, %p67
    %p70 = scmp.ne.s32.totalorder %s53, %s69
    %p71 = scmp.eq.s32.totalorder %s19, 0
    %p72 = por %p70, %p71
    %s73 = ssub.s32 %s13, %s20
    %p74 = scmp.eq.s32.totalorder %s73, 0
    %s76 = sadd.s32 %s75, 1
    %s77 = scalar_select %p74, %s75, %s76
    %p80 = pneg %p74
    %p81 = scmp.eq.s32.totalorder %s13, 1
    %p82 = por %p80, %p81
    %p83 = scmp.ne.s32.totalorder %s75, %s78
    %p84 = scmp.eq.s32.totalorder %s13, 0
    %p85 = por %p83, %p84
    %p86 = scmp.ne.s32.totalorder %s75, %s78
    %p87 = scmp.eq.s32.totalorder %s18, 1
    %p88 = por %p86, %p87
    %p89 = scmp.ne.s32.totalorder %s78, %s79
    %p90 = scmp.eq.s32.totalorder %s18, 0
    %p91 = por %p89, %p90
    %p92 = scmp.ne.s32.totalorder %s78, %s79
    %p93 = scmp.eq.s32.totalorder %s19, 1
    %p94 = por %p92, %p93
    %p96 = scmp.ne.s32.totalorder %s79, %s95
    %p97 = scmp.eq.s32.totalorder %s19, 0
    %p98 = por %p96, %p97
    %s100 = sadd.s32 %s99, 1
    %p103 = scmp.eq.s32.totalorder %s13, 1
    %p104 = scmp.ne.s32.totalorder %s99, %s101
    %p105 = scmp.eq.s32.totalorder %s13, 0
    %p106 = por %p104, %p105
    %p107 = scmp.ne.s32.totalorder %s99, %s101
    %p108 = scmp.eq.s32.totalorder %s18, 1
    %p109 = por %p107, %p108
    %p110 = scmp.ne.s32.totalorder %s101, %s102
    %p111 = scmp.eq.s32.totalorder %s18, 0
    %p112 = por %p110, %p111
    %p113 = scmp.ne.s32.totalorder %s101, %s102
    %p114 = scmp.eq.s32.totalorder %s19, 1
    %p115 = por %p113, %p114
    %p117 = scmp.ne.s32.totalorder %s102, %s116
    %p118 = scmp.eq.s32.totalorder %s19, 0
    %p119 = por %p117, %p118
    %s121 = sadd.s32 %s120, 1
    %p124 = scmp.eq.s32.totalorder %s13, 1
    %p125 = scmp.ne.s32.totalorder %s120, %s122
    %p126 = scmp.eq.s32.totalorder %s13, 0
    %p127 = por %p125, %p126
    %p128 = scmp.ne.s32.totalorder %s120, %s122
    %p129 = scmp.eq.s32.totalorder %s18, 1
    %p130 = por %p128, %p129
    %p131 = scmp.ne.s32.totalorder %s122, %s123
    %p132 = scmp.eq.s32.totalorder %s18, 0
    %p133 = por %p131, %p132
    %p134 = scmp.ne.s32.totalorder %s122, %s123
    %p135 = scmp.eq.s32.totalorder %s19, 1
    %p136 = por %p134, %p135
    %p138 = scmp.ne.s32.totalorder %s123, %s137
    %p139 = scmp.eq.s32.totalorder %s19, 0
    %p140 = por %p138, %p139
    %s142 = sadd.s32 %s141, 1
    %p145 = scmp.eq.s32.totalorder %s13, 1
    %p146 = scmp.ne.s32.totalorder %s141, %s143
    %p147 = scmp.eq.s32.totalorder %s13, 0
    %p148 = por %p146, %p147
    %p149 = scmp.ne.s32.totalorder %s141, %s143
    %p150 = scmp.eq.s32.totalorder %s18, 1
    %p151 = por %p149, %p150
    %p152 = scmp.ne.s32.totalorder %s143, %s144
    %p153 = scmp.eq.s32.totalorder %s18, 0
    %p154 = por %p152, %p153
    %p155 = scmp.ne.s32.totalorder %s143, %s144
    %p156 = scmp.eq.s32.totalorder %s19, 1
    %p157 = por %p155, %p156
    %p159 = scmp.ne.s32.totalorder %s144, %s158
    %p160 = scmp.eq.s32.totalorder %s19, 0
    %p161 = por %p159, %p160
    %s163 = sadd.s32 %s162, 1
    %p166 = scmp.eq.s32.totalorder %s13, 1
    %p167 = scmp.ne.s32.totalorder %s162, %s164
    %p168 = scmp.eq.s32.totalorder %s13, 0
    %p169 = por %p167, %p168
    %p170 = scmp.ne.s32.totalorder %s162, %s164
    %p171 = scmp.eq.s32.totalorder %s18, 1
    %p172 = por %p170, %p171
    %p173 = scmp.ne.s32.totalorder %s164, %s165
    %p174 = scmp.eq.s32.totalorder %s18, 0
    %p175 = por %p173, %p174
    %p176 = scmp.ne.s32.totalorder %s164, %s165
    %p177 = scmp.eq.s32.totalorder %s19, 1
    %p178 = por %p176, %p177
    %p180 = scmp.ne.s32.totalorder %s165, %s179
    %p181 = scmp.eq.s32.totalorder %s19, 0
    %p182 = por %p180, %p181
    %s183 = ssub.s32 %s13, %s20
    %p184 = scmp.eq.s32.totalorder %s183, 0
    %s186 = sadd.s32 %s185, 1
    %s187 = scalar_select %p184, %s185, %s186
    %p190 = pneg %p184
    %p191 = scmp.eq.s32.totalorder %s13, 1
    %p192 = por %p190, %p191
    %p193 = scmp.ne.s32.totalorder %s185, %s188
    %p194 = scmp.eq.s32.totalorder %s13, 0
    %p195 = por %p193, %p194
    %p196 = scmp.ne.s32.totalorder %s185, %s188
    %p197 = scmp.eq.s32.totalorder %s18, 1
    %p198 = por %p196, %p197
    %p199 = scmp.ne.s32.totalorder %s188, %s189
    %p200 = scmp.eq.s32.totalorder %s18, 0
    %p201 = por %p199, %p200
    %p202 = scmp.ne.s32.totalorder %s188, %s189
    %p203 = scmp.eq.s32.totalorder %s19, 1
    %p204 = por %p202, %p203
    %p206 = scmp.ne.s32.totalorder %s189, %s205
    %p207 = scmp.eq.s32.totalorder %s19, 0
    %p208 = por %p206, %p207
    %p209 = scmp.le.s32.totalorder 1, %s13
    %p210 = scmp.lt.s32.totalorder %s13, 3
    %p211 = pnand %p209, %p210
    %p212 = pneg %p211
    // Predicated region
    $region9: #{bert_class_forward.10} parent=5 // pred_check
      _
    $region10: #{bert_class_forward.10} parent=5 // pred_check_branch
      %214 = sbr.rel (%p211) target = $region12
    $region11: #{bert_class_forward.10} parent=5 // pred_region
      %s215 = ssub.s32 %s13, 1
      // Predicated region
      $region13: #{bert_class_forward.10} parent=11 // pred_check
        %p216 = pneg %p112
      $region14: #{bert_class_forward.10} parent=11 // pred_check_branch
        %218 = sbr.rel (%p216) target = $region16
      $region15: #{bert_class_forward.10} parent=11 // pred_region
        _
      $region16: #{bert_class_forward.10} parent=11 // pred_fallthru
        _
      // Predicated region
      $region17: #{bert_class_forward.10} parent=11 // pred_check
        %p219 = pneg %p133
      $region18: #{bert_class_forward.10} parent=11 // pred_check_branch
        %221 = sbr.rel (%p219) target = $region20
      $region19: #{bert_class_forward.10} parent=11 // pred_region
        _
      $region20: #{bert_class_forward.10} parent=11 // pred_fallthru
        _
      // Predicated region
      $region21: #{bert_class_forward.10} parent=11 // pred_check
        %p222 = pneg %p154
      $region22: #{bert_class_forward.10} parent=11 // pred_check_branch
        %224 = sbr.rel (%p222) target = $region24
      $region23: #{bert_class_forward.10} parent=11 // pred_region
        _
      $region24: #{bert_class_forward.10} parent=11 // pred_fallthru
        _
      // Predicated region
      $region25: #{bert_class_forward.10} parent=11 // pred_check
        %p225 = pneg %p175
      $region26: #{bert_class_forward.10} parent=11 // pred_check_branch
        %227 = sbr.rel (%p225) target = $region28
      $region27: #{bert_class_forward.10} parent=11 // pred_region
        _
      $region28: #{bert_class_forward.10} parent=11 // pred_fallthru
        _
    $region12: #{bert_class_forward.10} parent=5 // pred_fallthru
      _
    %p228 = scmp.lt.s32.totalorder %s13, 2
    // Predicated region
    $region29: #{bert_class_forward.10} parent=5 // pred_check
      %p229 = pneg %p228
    $region30: #{bert_class_forward.10} parent=5 // pred_check_branch
      %231 = sbr.rel (%p229) target = $region32
    $region31: #{bert_class_forward.10} parent=5 // pred_region
      // Predicated region
      $region33: #{bert_class_forward.10} parent=31 // pred_check
        %p232 = pneg %p33
      $region34: #{bert_class_forward.10} parent=31 // pred_check_branch
        %234 = sbr.rel (%p232) target = $region36
      $region35: #{bert_class_forward.10} parent=31 // pred_region
        %p235 = scmp.lt.s32.totalorder %s13, 1
        %s236 = scalar_select %p235, %s13, 1
        %s237 = smul.addr %s236, 4
        %s238 = scalar_lea.vmem %s0, %s237
      $region36: #{bert_class_forward.10} parent=31 // pred_fallthru
        _
      // Predicated region
      $region37: #{bert_class_forward.10} parent=31 // pred_check
        %p239 = pneg %p59
      $region38: #{bert_class_forward.10} parent=31 // pred_check_branch
        %241 = sbr.rel (%p239) target = $region40
      $region39: #{bert_class_forward.10} parent=31 // pred_region
        %p242 = scmp.lt.s32.totalorder %s13, 1
        %s243 = scalar_select %p242, %s13, 1
        %s244 = scalar_lea.vmem %s1, %s243
      $region40: #{bert_class_forward.10} parent=31 // pred_fallthru
        _
      // Predicated region
      $region41: #{bert_class_forward.10} parent=31 // pred_check
        %p245 = pneg %p85
      $region42: #{bert_class_forward.10} parent=31 // pred_check_branch
        %247 = sbr.rel (%p245) target = $region44
      $region43: #{bert_class_forward.10} parent=31 // pred_region
        %p248 = scmp.lt.s32.totalorder %s13, 1
        %s249 = scalar_select %p248, %s13, 1
        %s250 = smul.addr %s249, 4
        %s251 = scalar_lea.vmem %s2, %s250
      $region44: #{bert_class_forward.10} parent=31 // pred_fallthru
        _
    $region32: #{bert_class_forward.10} parent=5 // pred_fallthru
      _
    %p252 = scmp.le.s32.totalorder 1, %s13
    %p253 = scmp.lt.s32.totalorder %s13, 3
    %p254 = pnand %p252, %p253
    %p255 = pneg %p254
    // Predicated region
    $region45: #{bert_class_forward.10} parent=5 // pred_check
      _
    $region46: #{bert_class_forward.10} parent=5 // pred_check_branch
      %257 = sbr.rel (%p254) target = $region48
    $region47: #{bert_class_forward.10} parent=5 // pred_region
      %s258 = ssub.s32 %s13, 1
      %p259 = scmp.lt.s32.totalorder %s18, 1
      %s260 = scalar_select %p259, %s18, 1
      %s261 = smul.addr %s260, 4
      %s262 = scalar_lea.vmem %s0, %s261
      %p263 = pneg %p39
      %p264 = pneg %p36
      %p265 = scmp.lt.s32.totalorder %s18, 1
      %s266 = scalar_select %p265, %s18, 1
      %s267 = scalar_lea.vmem %s1, %s266
      %p268 = pneg %p65
      %p269 = pneg %p62
      %p270 = scmp.lt.s32.totalorder %s18, 1
      %s271 = scalar_select %p270, %s18, 1
      %s272 = smul.addr %s271, 4
      %s273 = scalar_lea.vmem %s2, %s272
      %p274 = pneg %p91
      %p275 = pneg %p88
      %p276 = pneg %p112
      %p277 = pneg %p109
      %p278 = pneg %p133
      %p279 = pneg %p130
      %p280 = pneg %p154
      %p281 = pneg %p151
      %p282 = pneg %p175
      %p283 = pneg %p172
      %p284 = pneg %p201
      %p285 = pneg %p198
      %p286 = scmp.lt.s32.totalorder %s18, 1
      %s287 = scalar_select %p286, %s18, 1
      %s288 = smul.addr %s287, 4
      %s289 = scalar_lea.vmem %s7, %s288
      %p290 = scmp.lt.s32.totalorder %s18, 1
      %s291 = scalar_select %p290, %s18, 1
      %s292 = smul.addr %s291, 4
      %s293 = scalar_lea.vmem %s0, %s292
      %p294 = scmp.lt.s32.totalorder %s18, 1
      %s295 = scalar_select %p294, %s18, 1
      %s296 = scalar_lea.vmem %s1, %s295
      %p297 = scmp.lt.s32.totalorder %s18, 1
      %s298 = scalar_select %p297, %s18, 1
      %s299 = smul.addr %s298, 4
      %s300 = scalar_lea.vmem %s2, %s299
      %p301 = scmp.lt.s32.totalorder %s18, 1
      %s302 = scalar_select %p301, %s18, 1
      %s303 = smul.addr %s302, 4
      %s304 = scalar_lea.vmem %s7, %s303
      %v306 = vld [vmem:[%s293] sm:$0xf]
      %v307 = vld [vmem:[%s296] sm:$0x1]
      %v309 = vlaneseq
      %v310 = vshrl.u32 %v309, 7
      %v311 = vsub.s32 0, %v310
      %v312 = vrot.slane %v307, %v311
      %v315 = vunpack.c.l.b16 %v306
      %v316 = vpack.c.b16 %v315, %v315
      %317 = vrot.lane.b32.xlu0 %v316, 96
      %v318 = vpop.permute.xlu0 %317
      %vm319 = vcmask 64512
      %v321 = vsel %vm319, %v306, 0
      %v324 = vsel %vm319, %v318, 0
      %326 = vmatprep.subr.bf16.mxu0 0
      %327 = vmatpush1.bf16.xpose.msra.mxu0 0
      %328 = vmatprep.subr.bf16.mxu0 0
      %329 = vmatpush1.bf16.xpose.msra.mxu0 0
      %330 = vmatprep.subr.bf16.mxu0 0
      %331 = vmatpush1.bf16.xpose.msra.mxu0 0
      %332 = vmatprep.subr.bf16.mxu0 0
      %333 = vmatpush1.bf16.xpose.msra.mxu0 0
      %334 = vmatprep.subr.bf16.mxu0 0
      %335 = vmatpush1.bf16.xpose.msra.mxu0 0
      %336 = vmatprep.subr.bf16.mxu0 0
      %337 = vmatpush1.bf16.xpose.msra.mxu0 0
      %338 = vmatprep.subr.bf16.mxu0 0
      %339 = vmatpush1.bf16.xpose.msra.mxu0 0
      %340 = vmatprep.subr.bf16.mxu0 0
      %341 = vmatpush1.bf16.xpose.msra.mxu0 %v324
      %342 = vmatprep.subr.bf16.mxu0 0
      %343 = vmatpush2.bf16.xpose.msra.mxu0 0
      %344 = vmatprep.subr.bf16.mxu0 0
      %345 = vmatpush2.bf16.xpose.msra.mxu0 0
      %346 = vmatprep.subr.bf16.mxu0 0
      %347 = vmatpush2.bf16.xpose.msra.mxu0 0
      %348 = vmatprep.subr.bf16.mxu0 0
      %349 = vmatpush2.bf16.xpose.msra.mxu0 0
      %350 = vmatprep.subr.bf16.mxu0 0
      %351 = vmatpush2.bf16.xpose.msra.mxu0 0
      %352 = vmatprep.subr.bf16.mxu0 0
      %353 = vmatpush2.bf16.xpose.msra.mxu0 0
      %354 = vmatprep.subr.bf16.mxu0 0
      %355 = vmatpush2.bf16.xpose.msra.mxu0 0
      %356 = vmatprep.subr.bf16.mxu0 0
      %357 = vmatpush2.bf16.xpose.msra.mxu0 0
      %358 = vmatprep.mubr.bf16.mxu0 0
      %359 = vmatmul.mubr.bf16.gmra.mxu0 %v321
      %v360 = vpop.f32.mrf.mxu0
      %v361 = vadd.f32 %v312, %v360
      %v362 = vpop.f32.mrf.mxu0
      %v363 = vpop.f32.mrf.mxu0
      %v364 = vpop.f32.mrf.mxu0
      %365 = vdwg.mxu0
      %v366 = vsel %vm319, %v361, -inf
      %367 = vmax.xlane.f32.xlu0 %v366
      %v368 = vpop.xlane.xlu0 %367
      %v369 = vsub.f32 %v361, %v368
      %v370 = vmul.f32 %v369, 1.442695
      %v371 = vpow.pop %v370
      %v372 = vsel %vm319, %v371, 0.0
      %373 = vadd.xlane.f32.xlu0 %v372
      %v374 = vpop.xlane.xlu0 %373
      %v375 = vrcp.pop %v374
      %v376 = vmul.f32 %v371, %v375
      %v377 = vpack.c.bf16 %v376, %v376
      %378 = vrot.lane.b32.xlu0 %v316, 64
      %v379 = vpop.permute.xlu0 %378
      %v381 = vsel %vm319, %v377, 0
      %vm383 = vcmask 1043456
      %v385 = vsel %vm383, %v379, 0
      %387 = vmatprep.subr.bf16.mxu0 0
      %388 = vmatpush1.bf16.msra.mxu0 0
      %389 = vmatprep.subr.bf16.mxu0 0
      %390 = vmatpush1.bf16.msra.mxu0 0
      %391 = vmatprep.subr.bf16.mxu0 0
      %392 = vmatpush1.bf16.msra.mxu0 0
      %393 = vmatprep.subr.bf16.mxu0 0
      %394 = vmatpush1.bf16.msra.mxu0 0
      %395 = vmatprep.subr.bf16.mxu0 0
      %396 = vmatpush1.bf16.msra.mxu0 0
      %397 = vmatprep.subr.bf16.mxu0 0
      %398 = vmatpush1.bf16.msra.mxu0 0
      %399 = vmatprep.subr.bf16.mxu0 0
      %400 = vmatpush1.bf16.msra.mxu0 0
      %401 = vmatprep.subr.bf16.mxu0 0
      %402 = vmatpush1.bf16.msra.mxu0 %v385
      %403 = vmatprep.subr.bf16.mxu0 0
      %404 = vmatpush2.bf16.msra.mxu0 0
      %405 = vmatprep.subr.bf16.mxu0 0
      %406 = vmatpush2.bf16.msra.mxu0 0
      %407 = vmatprep.subr.bf16.mxu0 0
      %408 = vmatpush2.bf16.msra.mxu0 0
      %409 = vmatprep.subr.bf16.mxu0 0
      %410 = vmatpush2.bf16.msra.mxu0 0
      %411 = vmatprep.subr.bf16.mxu0 0
      %412 = vmatpush2.bf16.msra.mxu0 0
      %413 = vmatprep.subr.bf16.mxu0 0
      %414 = vmatpush2.bf16.msra.mxu0 0
      %415 = vmatprep.subr.bf16.mxu0 0
      %416 = vmatpush2.bf16.msra.mxu0 0
      %417 = vmatprep.subr.bf16.mxu0 0
      %418 = vmatpush2.bf16.msra.mxu0 0
      %419 = vmatprep.mubr.bf16.mxu0 0
      %420 = vmatmul.mubr.bf16.gmra.mxu0 %v381
      %v421 = vpop.f32.mrf.mxu0
      %v422 = vadd.f32 0.0, %v421
      %v423 = vpop.f32.mrf.mxu0
      %v424 = vpop.f32.mrf.mxu0
      %v425 = vpop.f32.mrf.mxu0
      %426 = vdwg.mxu0
      %427 = vst.msk [vmem:[#allocation2] sm:$0xff] %vm319, %v422
      %428 = vrot.lane.b32.xlu0 %v316, 120
      %v429 = vpop.permute.xlu0 %428
      %430 = vrot.lane.b32.xlu0 %v316, 88
      %v431 = vpop.permute.xlu0 %430
      %v433 = vsel %vm319, %v429, 0
      %v436 = vsel %vm319, %v431, 0
      %438 = vmatprep.subr.bf16.mxu0 0
      %439 = vmatpush1.bf16.xpose.msra.mxu0 0
      %440 = vmatprep.subr.bf16.mxu0 0
      %441 = vmatpush1.bf16.xpose.msra.mxu0 0
      %442 = vmatprep.subr.bf16.mxu0 0
      %443 = vmatpush1.bf16.xpose.msra.mxu0 0
      %444 = vmatprep.subr.bf16.mxu0 0
      %445 = vmatpush1.bf16.xpose.msra.mxu0 0
      %446 = vmatprep.subr.bf16.mxu0 0
      %447 = vmatpush1.bf16.xpose.msra.mxu0 0
      %448 = vmatprep.subr.bf16.mxu0 0
      %449 = vmatpush1.bf16.xpose.msra.mxu0 0
      %450 = vmatprep.subr.bf16.mxu0 0
      %451 = vmatpush1.bf16.xpose.msra.mxu0 0
      %452 = vmatprep.subr.bf16.mxu0 0
      %453 = vmatpush1.bf16.xpose.msra.mxu0 %v436
      %454 = vmatprep.subr.bf16.mxu0 0
      %455 = vmatpush2.bf16.xpose.msra.mxu0 0
      %456 = vmatprep.subr.bf16.mxu0 0
      %457 = vmatpush2.bf16.xpose.msra.mxu0 0
      %458 = vmatprep.subr.bf16.mxu0 0
      %459 = vmatpush2.bf16.xpose.msra.mxu0 0
      %460 = vmatprep.subr.bf16.mxu0 0
      %461 = vmatpush2.bf16.xpose.msra.mxu0 0
      %462 = vmatprep.subr.bf16.mxu0 0
      %463 = vmatpush2.bf16.xpose.msra.mxu0 0
      %464 = vmatprep.subr.bf16.mxu0 0
      %465 = vmatpush2.bf16.xpose.msra.mxu0 0
      %466 = vmatprep.subr.bf16.mxu0 0
      %467 = vmatpush2.bf16.xpose.msra.mxu0 0
      %468 = vmatprep.subr.bf16.mxu0 0
      %469 = vmatpush2.bf16.xpose.msra.mxu0 0
      %470 = vmatprep.mubr.bf16.mxu0 0
      %471 = vmatmul.mubr.bf16.gmra.mxu0 %v433
      %v472 = vpop.f32.mrf.mxu0
      %v473 = vadd.f32 %v312, %v472
      %v474 = vpop.f32.mrf.mxu0
      %v475 = vpop.f32.mrf.mxu0
      %v476 = vpop.f32.mrf.mxu0
      %477 = vdwg.mxu0
      %v478 = vsel %vm319, %v473, -inf
      %479 = vmax.xlane.f32.xlu0 %v478
      %v480 = vpop.xlane.xlu0 %479
      %v481 = vsub.f32 %v473, %v480
      %v482 = vmul.f32 %v481, 1.442695
      %v483 = vpow.pop %v482
      %v484 = vsel %vm319, %v483, 0.0
      %485 = vadd.xlane.f32.xlu0 %v484
      %v486 = vpop.xlane.xlu0 %485
      %v487 = vrcp.pop %v486
      %v488 = vmul.f32 %v483, %v487
      %v489 = vpack.c.bf16 %v488, %v488
      %490 = vrot.lane.b32.xlu0 %v316, 56
      %v491 = vpop.permute.xlu0 %490
      %v493 = vsel %vm319, %v489, 0
      %v496 = vsel %vm383, %v491, 0
      %498 = vmatprep.subr.bf16.mxu0 0
      %499 = vmatpush1.bf16.msra.mxu0 0
      %500 = vmatprep.subr.bf16.mxu0 0
      %501 = vmatpush1.bf16.msra.mxu0 0
      %502 = vmatprep.subr.bf16.mxu0 0
      %503 = vmatpush1.bf16.msra.mxu0 0
      %504 = vmatprep.subr.bf16.mxu0 0
      %505 = vmatpush1.bf16.msra.mxu0 0
      %506 = vmatprep.subr.bf16.mxu0 0
      %507 = vmatpush1.bf16.msra.mxu0 0
      %508 = vmatprep.subr.bf16.mxu0 0
      %509 = vmatpush1.bf16.msra.mxu0 0
      %510 = vmatprep.subr.bf16.mxu0 0
      %511 = vmatpush1.bf16.msra.mxu0 0
      %512 = vmatprep.subr.bf16.mxu0 0
      %513 = vmatpush1.bf16.msra.mxu0 %v496
      %514 = vmatprep.subr.bf16.mxu0 0
      %515 = vmatpush2.bf16.msra.mxu0 0
      %516 = vmatprep.subr.bf16.mxu0 0
      %517 = vmatpush2.bf16.msra.mxu0 0
      %518 = vmatprep.subr.bf16.mxu0 0
      %519 = vmatpush2.bf16.msra.mxu0 0
      %520 = vmatprep.subr.bf16.mxu0 0
      %521 = vmatpush2.bf16.msra.mxu0 0
      %522 = vmatprep.subr.bf16.mxu0 0
      %523 = vmatpush2.bf16.msra.mxu0 0
      %524 = vmatprep.subr.bf16.mxu0 0
      %525 = vmatpush2.bf16.msra.mxu0 0
      %526 = vmatprep.subr.bf16.mxu0 0
      %527 = vmatpush2.bf16.msra.mxu0 0
      %528 = vmatprep.subr.bf16.mxu0 0
      %529 = vmatpush2.bf16.msra.mxu0 0
      %530 = vmatprep.mubr.bf16.mxu0 0
      %531 = vmatmul.mubr.bf16.gmra.mxu0 %v493
      %v532 = vpop.f32.mrf.mxu0
      %v533 = vadd.f32 0.0, %v532
      %v534 = vpop.f32.mrf.mxu0
      %v535 = vpop.f32.mrf.mxu0
      %v536 = vpop.f32.mrf.mxu0
      %537 = vdwg.mxu0
      %539 = vrot.lane.b32.xlu0 %v533, 8
      %v540 = vpop.permute.xlu0 %539
      %vm542 = vcmask 130112
      %543 = vst.msk [vmem:[#allocation2] sm:$0xff] %vm542, %v540
      %544 = vrot.lane.b32.xlu0 %v316, 112
      %v545 = vpop.permute.xlu0 %544
      %546 = vrot.lane.b32.xlu0 %v316, 80
      %v547 = vpop.permute.xlu0 %546
      %v549 = vsel %vm319, %v545, 0
      %v552 = vsel %vm319, %v547, 0
      %554 = vmatprep.subr.bf16.mxu0 0
      %555 = vmatpush1.bf16.xpose.msra.mxu0 0
      %556 = vmatprep.subr.bf16.mxu0 0
      %557 = vmatpush1.bf16.xpose.msra.mxu0 0
      %558 = vmatprep.subr.bf16.mxu0 0
      %559 = vmatpush1.bf16.xpose.msra.mxu0 0
      %560 = vmatprep.subr.bf16.mxu0 0
      %561 = vmatpush1.bf16.xpose.msra.mxu0 0
      %562 = vmatprep.subr.bf16.mxu0 0
      %563 = vmatpush1.bf16.xpose.msra.mxu0 0
      %564 = vmatprep.subr.bf16.mxu0 0
      %565 = vmatpush1.bf16.xpose.msra.mxu0 0
      %566 = vmatprep.subr.bf16.mxu0 0
      %567 = vmatpush1.bf16.xpose.msra.mxu0 0
      %568 = vmatprep.subr.bf16.mxu0 0
      %569 = vmatpush1.bf16.xpose.msra.mxu0 %v552
      %570 = vmatprep.subr.bf16.mxu0 0
      %571 = vmatpush2.bf16.xpose.msra.mxu0 0
      %572 = vmatprep.subr.bf16.mxu0 0
      %573 = vmatpush2.bf16.xpose.msra.mxu0 0
      %574 = vmatprep.subr.bf16.mxu0 0
      %575 = vmatpush2.bf16.xpose.msra.mxu0 0
      %576 = vmatprep.subr.bf16.mxu0 0
      %577 = vmatpush2.bf16.xpose.msra.mxu0 0
      %578 = vmatprep.subr.bf16.mxu0 0
      %579 = vmatpush2.bf16.xpose.msra.mxu0 0
      %580 = vmatprep.subr.bf16.mxu0 0
      %581 = vmatpush2.bf16.xpose.msra.mxu0 0
      %582 = vmatprep.subr.bf16.mxu0 0
      %583 = vmatpush2.bf16.xpose.msra.mxu0 0
      %584 = vmatprep.subr.bf16.mxu0 0
      %585 = vmatpush2.bf16.xpose.msra.mxu0 0
      %586 = vmatprep.mubr.bf16.mxu0 0
      %587 = vmatmul.mubr.bf16.gmra.mxu0 %v549
      %v588 = vpop.f32.mrf.mxu0
      %v589 = vadd.f32 %v312, %v588
      %v590 = vpop.f32.mrf.mxu0
      %v591 = vpop.f32.mrf.mxu0
      %v592 = vpop.f32.mrf.mxu0
      %593 = vdwg.mxu0
      %v594 = vsel %vm319, %v589, -inf
      %595 = vmax.xlane.f32.xlu0 %v594
      %v596 = vpop.xlane.xlu0 %595
      %v597 = vsub.f32 %v589, %v596
      %v598 = vmul.f32 %v597, 1.442695
      %v599 = vpow.pop %v598
      %v600 = vsel %vm319, %v599, 0.0
      %601 = vadd.xlane.f32.xlu0 %v600
      %v602 = vpop.xlane.xlu0 %601
      %v603 = vrcp.pop %v602
      %v604 = vmul.f32 %v599, %v603
      %v605 = vpack.c.bf16 %v604, %v604
      %606 = vrot.lane.b32.xlu0 %v316, 48
      %v607 = vpop.permute.xlu0 %606
      %v609 = vsel %vm319, %v605, 0
      %v612 = vsel %vm383, %v607, 0
      %614 = vmatprep.subr.bf16.mxu0 0
      %615 = vmatpush1.bf16.msra.mxu0 0
      %616 = vmatprep.subr.bf16.mxu0 0
      %617 = vmatpush1.bf16.msra.mxu0 0
      %618 = vmatprep.subr.bf16.mxu0 0
      %619 = vmatpush1.bf16.msra.mxu0 0
      %620 = vmatprep.subr.bf16.mxu0 0
      %621 = vmatpush1.bf16.msra.mxu0 0
      %622 = vmatprep.subr.bf16.mxu0 0
      %623 = vmatpush1.bf16.msra.mxu0 0
      %624 = vmatprep.subr.bf16.mxu0 0
      %625 = vmatpush1.bf16.msra.mxu0 0
      %626 = vmatprep.subr.bf16.mxu0 0
      %627 = vmatpush1.bf16.msra.mxu0 0
      %628 = vmatprep.subr.bf16.mxu0 0
      %629 = vmatpush1.bf16.msra.mxu0 %v612
      %630 = vmatprep.subr.bf16.mxu0 0
      %631 = vmatpush2.bf16.msra.mxu0 0
      %632 = vmatprep.subr.bf16.mxu0 0
      %633 = vmatpush2.bf16.msra.mxu0 0
      %634 = vmatprep.subr.bf16.mxu0 0
      %635 = vmatpush2.bf16.msra.mxu0 0
      %636 = vmatprep.subr.bf16.mxu0 0
      %637 = vmatpush2.bf16.msra.mxu0 0
      %638 = vmatprep.subr.bf16.mxu0 0
      %639 = vmatpush2.bf16.msra.mxu0 0
      %640 = vmatprep.subr.bf16.mxu0 0
      %641 = vmatpush2.bf16.msra.mxu0 0
      %642 = vmatprep.subr.bf16.mxu0 0
      %643 = vmatpush2.bf16.msra.mxu0 0
      %644 = vmatprep.subr.bf16.mxu0 0
      %645 = vmatpush2.bf16.msra.mxu0 0
      %646 = vmatprep.mubr.bf16.mxu0 0
      %647 = vmatmul.mubr.bf16.gmra.mxu0 %v609
      %v648 = vpop.f32.mrf.mxu0
      %v649 = vadd.f32 0.0, %v648
      %v650 = vpop.f32.mrf.mxu0
      %v651 = vpop.f32.mrf.mxu0
      %v652 = vpop.f32.mrf.mxu0
      %653 = vdwg.mxu0
      %655 = vrot.lane.b32.xlu0 %v649, 16
      %v656 = vpop.permute.xlu0 %655
      %vm658 = vcmask 195712
      %659 = vst.msk [vmem:[#allocation2] sm:$0xff] %vm658, %v656
      %660 = vrot.lane.b32.xlu0 %v316, 104
      %v661 = vpop.permute.xlu0 %660
      %662 = vrot.lane.b32.xlu0 %v316, 72
      %v663 = vpop.permute.xlu0 %662
      %v665 = vsel %vm319, %v661, 0
      %v668 = vsel %vm319, %v663, 0
      %670 = vmatprep.subr.bf16.mxu0 0
      %671 = vmatpush1.bf16.xpose.msra.mxu0 0
      %672 = vmatprep.subr.bf16.mxu0 0
      %673 = vmatpush1.bf16.xpose.msra.mxu0 0
      %674 = vmatprep.subr.bf16.mxu0 0
      %675 = vmatpush1.bf16.xpose.msra.mxu0 0
      %676 = vmatprep.subr.bf16.mxu0 0
      %677 = vmatpush1.bf16.xpose.msra.mxu0 0
      %678 = vmatprep.subr.bf16.mxu0 0
      %679 = vmatpush1.bf16.xpose.msra.mxu0 0
      %680 = vmatprep.subr.bf16.mxu0 0
      %681 = vmatpush1.bf16.xpose.msra.mxu0 0
      %682 = vmatprep.subr.bf16.mxu0 0
      %683 = vmatpush1.bf16.xpose.msra.mxu0 0
      %684 = vmatprep.subr.bf16.mxu0 0
      %685 = vmatpush1.bf16.xpose.msra.mxu0 %v668
      %686 = vmatprep.subr.bf16.mxu0 0
      %687 = vmatpush2.bf16.xpose.msra.mxu0 0
      %688 = vmatprep.subr.bf16.mxu0 0
      %689 = vmatpush2.bf16.xpose.msra.mxu0 0
      %690 = vmatprep.subr.bf16.mxu0 0
      %691 = vmatpush2.bf16.xpose.msra.mxu0 0
      %692 = vmatprep.subr.bf16.mxu0 0
      %693 = vmatpush2.bf16.xpose.msra.mxu0 0
      %694 = vmatprep.subr.bf16.mxu0 0
      %695 = vmatpush2.bf16.xpose.msra.mxu0 0
      %696 = vmatprep.subr.bf16.mxu0 0
      %697 = vmatpush2.bf16.xpose.msra.mxu0 0
      %698 = vmatprep.subr.bf16.mxu0 0
      %699 = vmatpush2.bf16.xpose.msra.mxu0 0
      %700 = vmatprep.subr.bf16.mxu0 0
      %701 = vmatpush2.bf16.xpose.msra.mxu0 0
      %702 = vmatprep.mubr.bf16.mxu0 0
      %703 = vmatmul.mubr.bf16.gmra.mxu0 %v665
      %v704 = vpop.f32.mrf.mxu0
      %v705 = vadd.f32 %v312, %v704
      %v706 = vpop.f32.mrf.mxu0
      %v707 = vpop.f32.mrf.mxu0
      %v708 = vpop.f32.mrf.mxu0
      %709 = vdwg.mxu0
      %v710 = vsel %vm319, %v705, -inf
      %711 = vmax.xlane.f32.xlu0 %v710
      %v712 = vpop.xlane.xlu0 %711
      %v713 = vsub.f32 %v705, %v712
      %v714 = vmul.f32 %v713, 1.442695
      %v715 = vpow.pop %v714
      %v716 = vsel %vm319, %v715, 0.0
      %717 = vadd.xlane.f32.xlu0 %v716
      %v718 = vpop.xlane.xlu0 %717
      %v719 = vrcp.pop %v718
      %v720 = vmul.f32 %v715, %v719
      %v721 = vpack.c.bf16 %v720, %v720
      %722 = vrot.lane.b32.xlu0 %v316, 40
      %v723 = vpop.permute.xlu0 %722
      %v725 = vsel %vm319, %v721, 0
      %v728 = vsel %vm383, %v723, 0
      %730 = vmatprep.subr.bf16.mxu0 0
      %731 = vmatpush1.bf16.msra.mxu0 0
      %732 = vmatprep.subr.bf16.mxu0 0
      %733 = vmatpush1.bf16.msra.mxu0 0
      %734 = vmatprep.subr.bf16.mxu0 0
      %735 = vmatpush1.bf16.msra.mxu0 0
      %736 = vmatprep.subr.bf16.mxu0 0
      %737 = vmatpush1.bf16.msra.mxu0 0
      %738 = vmatprep.subr.bf16.mxu0 0
      %739 = vmatpush1.bf16.msra.mxu0 0
      %740 = vmatprep.subr.bf16.mxu0 0
      %741 = vmatpush1.bf16.msra.mxu0 0
      %742 = vmatprep.subr.bf16.mxu0 0
      %743 = vmatpush1.bf16.msra.mxu0 0
      %744 = vmatprep.subr.bf16.mxu0 0
      %745 = vmatpush1.bf16.msra.mxu0 %v728
      %746 = vmatprep.subr.bf16.mxu0 0
      %747 = vmatpush2.bf16.msra.mxu0 0
      %748 = vmatprep.subr.bf16.mxu0 0
      %749 = vmatpush2.bf16.msra.mxu0 0
      %750 = vmatprep.subr.bf16.mxu0 0
      %751 = vmatpush2.bf16.msra.mxu0 0
      %752 = vmatprep.subr.bf16.mxu0 0
      %753 = vmatpush2.bf16.msra.mxu0 0
      %754 = vmatprep.subr.bf16.mxu0 0
      %755 = vmatpush2.bf16.msra.mxu0 0
      %756 = vmatprep.subr.bf16.mxu0 0
      %757 = vmatpush2.bf16.msra.mxu0 0
      %758 = vmatprep.subr.bf16.mxu0 0
      %759 = vmatpush2.bf16.msra.mxu0 0
      %760 = vmatprep.subr.bf16.mxu0 0
      %761 = vmatpush2.bf16.msra.mxu0 0
      %762 = vmatprep.mubr.bf16.mxu0 0
      %763 = vmatmul.mubr.bf16.gmra.mxu0 %v725
      %v764 = vpop.f32.mrf.mxu0
      %v765 = vadd.f32 0.0, %v764
      %v766 = vpop.f32.mrf.mxu0
      %v767 = vpop.f32.mrf.mxu0
      %v768 = vpop.f32.mrf.mxu0
      %769 = vdwg.mxu0
      %771 = vrot.lane.b32.xlu0 %v765, 24
      %v772 = vpop.permute.xlu0 %771
      %vm774 = vcmask 261312
      %775 = vst.msk [vmem:[#allocation2] sm:$0xff] %vm774, %v772
      %v776 = vld [vmem:[#allocation2] sm:$0xff]
      %v777 = vpack.c.bf16 %v776, %v776
      %v778 = vld [vmem:[%s3] sm:$0xf]
      %v779 = vld [vmem:[%s3 + $0x4] sm:$0xf]
      %v780 = vld [vmem:[%s3 + $0x8] sm:$0xf]
      %v781 = vld [vmem:[%s3 + $0xc] sm:$0xf]
      %v782 = vld [vmem:[%s4] sm:$0x1]
      %v784 = vlaneseq
      %v785 = vshrl.u32 %v784, 7
      %v786 = vsub.s32 0, %v785
      %v787 = vrot.slane %v782, %v786
      %v793 = vunpack.c.l.b16 %v778
      %v794 = vunpack.c.l.b16 %v779
      %v795 = vunpack.c.l.b16 %v780
      %v796 = vunpack.c.l.b16 %v781
      %v797 = vpack.c.b16 %v794, %v793
      %v798 = vpack.c.b16 %v796, %v795
      %vm801 = vcmask 261120
      %v803 = vsel %vm801, %v777, 0
      %805 = vmatprep.subr.bf16.mxu0 0
      %806 = vmatpush1.bf16.msra.mxu0 0
      %807 = vmatprep.subr.bf16.mxu0 0
      %808 = vmatpush1.bf16.msra.mxu0 0
      %809 = vmatprep.subr.bf16.mxu0 0
      %810 = vmatpush1.bf16.msra.mxu0 0
      %811 = vmatprep.subr.bf16.mxu0 0
      %812 = vmatpush1.bf16.msra.mxu0 0
      %813 = vmatprep.subr.bf16.mxu0 0
      %814 = vmatpush1.bf16.msra.mxu0 0
      %815 = vmatprep.subr.bf16.mxu0 0
      %816 = vmatpush1.bf16.msra.mxu0 0
      %817 = vmatprep.subr.bf16.mxu0 0
      %818 = vmatpush1.bf16.msra.mxu0 %v798
      %819 = vmatprep.subr.bf16.mxu0 0
      %820 = vmatpush1.bf16.msra.mxu0 %v797
      %821 = vmatprep.subr.bf16.mxu0 0
      %822 = vmatpush2.bf16.msra.mxu0 0
      %823 = vmatprep.subr.bf16.mxu0 0
      %824 = vmatpush2.bf16.msra.mxu0 0
      %825 = vmatprep.subr.bf16.mxu0 0
      %826 = vmatpush2.bf16.msra.mxu0 0
      %827 = vmatprep.subr.bf16.mxu0 0
      %828 = vmatpush2.bf16.msra.mxu0 0
      %829 = vmatprep.subr.bf16.mxu0 0
      %830 = vmatpush2.bf16.msra.mxu0 0
      %831 = vmatprep.subr.bf16.mxu0 0
      %832 = vmatpush2.bf16.msra.mxu0 0
      %833 = vmatprep.subr.bf16.mxu0 0
      %834 = vmatpush2.bf16.msra.mxu0 0
      %835 = vmatprep.subr.bf16.mxu0 0
      %836 = vmatpush2.bf16.msra.mxu0 0
      %837 = vmatprep.mubr.bf16.mxu0 0
      %838 = vmatmul.mubr.bf16.gmra.mxu0 %v803
      %v839 = vpop.f32.mrf.mxu0
      %v840 = vadd.f32 %v787, %v839
      %v841 = vpop.f32.mrf.mxu0
      %v842 = vpop.f32.mrf.mxu0
      %v843 = vpop.f32.mrf.mxu0
      %844 = vdwg.mxu0
      %v845 = vld [vmem:[%s300] sm:$0xf]
      %v846 = vunpack.c.l.bf16 %v845
      %v847 = vadd.f32 %v840, %v846
      %v848 = vsel %vm801, %v847, 0.0
      %849 = vadd.xlane.f32.xlu0 %v848
      %v850 = vpop.xlane.xlu0 %849
      %v851 = vrcp.pop 32.0
      %v852 = vmul.f32 %v850, %v851
      %v853 = vsub.f32 %v847, %v852
      %v854 = vmul.f32 %v853, %v853
      %v855 = vsel %vm801, %v854, 0.0
      %856 = vadd.xlane.f32.xlu0 %v855
      %v857 = vpop.xlane.xlu0 %856
      %v858 = vmul.f32 %v857, %v851
      %v859 = vadd.f32 %v858, 1e-12
      %v860 = vrsqrt.pop %v859
      %v861 = vmul.f32 %v853, %v860
      %v862 = vld [vmem:[%s5] sm:$0x1]
      %v864 = vlaneseq
      %v865 = vshrl.u32 %v864, 7
      %v866 = vsub.s32 0, %v865
      %v867 = vrot.slane %v862, %v866
      %v869 = vmul.f32 %v861, %v867
      %v870 = vld [vmem:[%s6] sm:$0x1]
      %v872 = vlaneseq
      %v873 = vshrl.u32 %v872, 7
      %v874 = vsub.s32 0, %v873
      %v875 = vrot.slane %v870, %v874
      %v877 = vadd.f32 %v869, %v875
      %v878 = vpack.c.bf16 %v877, %v877
      %vm879 = vcmask 257024
      %880 = vst.msk [vmem:[%s304] sm:$0xf] %vm879, %v878
      %p881 = scmp.lt.s32.totalorder %s18, 1
      %s882 = scalar_select %p881, %s18, 1
      %s883 = smul.addr %s882, 4
      %s884 = scalar_lea.vmem %s7, %s883
      // Predicated region
      $region49: #{bert_class_forward.10} parent=47 // pred_check
        %p885 = pneg %p198
      $region50: #{bert_class_forward.10} parent=47 // pred_check_branch
        %887 = sbr.rel (%p885) target = $region52
      $region51: #{bert_class_forward.10} parent=47 // pred_region
        _
      $region52: #{bert_class_forward.10} parent=47 // pred_fallthru
        _
    $region48: #{bert_class_forward.10} parent=5 // pred_fallthru
      _
    %p888 = scmp.le.s32.totalorder 2, %s13
    // Predicated region
    $region53: #{bert_class_forward.10} parent=5 // pred_check
      %p889 = pneg %p888
    $region54: #{bert_class_forward.10} parent=5 // pred_check_branch
      %891 = sbr.rel (%p889) target = $region56
    $region55: #{bert_class_forward.10} parent=5 // pred_region
      %s892 = ssub.s32 %s13, 2
      // Predicated region
      $region57: #{bert_class_forward.10} parent=55 // pred_check
        %p893 = pneg %p204
      $region58: #{bert_class_forward.10} parent=55 // pred_check_branch
        %895 = sbr.rel (%p893) target = $region60
      $region59: #{bert_class_forward.10} parent=55 // pred_region
        %p896 = scmp.lt.s32.totalorder %s19, 1
        %s897 = scalar_select %p896, %s19, 1
        %s898 = smul.addr %s897, 4
        %s899 = scalar_lea.vmem %s7, %s898
      $region60: #{bert_class_forward.10} parent=55 // pred_fallthru
        _
    $region56: #{bert_class_forward.10} parent=5 // pred_fallthru
      _
  $region6: #{bert_class_forward.10} parent=0 // loop_footer
    %s17 = sadd.s32 1, %s13
  $region7: #{bert_class_forward.10} parent=0 // loop_footer_branch
    %12 = sbr.rel target = $region3
  $region8: #{bert_class_forward.10} parent=0 // loop_exit
    _

// kernel: bert_class_forward.15
$region0: #{bert_class_forward.15}
  #allocation0 [shape = 'u32[]', space=smem, size = 0x4, offset = 0x4, fixed_abs, tag = 'smem constant byte address 0x4 - core index']
  #allocation1 [shape = 'u32[144,128]{1,0:T(1,128)}', space=vmem, size = 0x12000, scoped, tag = 'internal scratch']
  %s0 = inlined_call_operand.vmem [shape: bf16[2,32], index: 0, kind: input, shape index: {}]
  %s1 = inlined_call_operand.vmem [shape: bf16[32,32], index: 1, kind: input, shape index: {}]
  %s2 = inlined_call_operand.vmem [shape: f32[1,32], index: 2, kind: input, shape index: {}]
  %s3 = inlined_call_operand.vmem [shape: bf16[32,128], index: 3, kind: input, shape index: {}]
  %s4 = inlined_call_operand.vmem [shape: f32[1,128], index: 4, kind: input, shape index: {}]
  %s5 = inlined_call_operand.hbm [shape: f32[2,128], index: 5, kind: output, shape index: {}]
  %s6 = sld [smem:[#allocation0]]
  $region30: #{bert_class_forward.15} parent=0
    _
  %s8 = ssub.s32 1, %s6
  %s9 = scalar_select 0, %s8, %s6
  $region1: #{bert_class_forward.15} parent=0
    #allocation2 [shape = 'u8[1024]{0}', space=vmem, size = 0x400, scoped, tag = 'output window, operand 0, single buffered']
    #allocation3 [shape = 's32[1]{0}', space=sflag, size = 0x4, scoped, tag = 'scoped memory for bert_class_forward.15']
    %10 = vsyncpa [#allocation3], 0
    // Predicated region
    $region2: #{bert_class_forward.15} parent=1 // pred_check
      _
    $region3: #{bert_class_forward.15} parent=1 // pred_check_branch
      %12 = sbr.rel (0) target = $region5
    $region4: #{bert_class_forward.15} parent=1 // pred_region
      _
    $region5: #{bert_class_forward.15} parent=1 // pred_fallthru
      _
    // Predicated region
    $region6: #{bert_class_forward.15} parent=1 // pred_check
      _
    $region7: #{bert_class_forward.15} parent=1 // pred_check_branch
      %14 = sbr.rel (0) target = $region9
    $region8: #{bert_class_forward.15} parent=1 // pred_region
      _
    $region9: #{bert_class_forward.15} parent=1 // pred_fallthru
      _
    // Predicated region
    $region10: #{bert_class_forward.15} parent=1 // pred_check
      _
    $region11: #{bert_class_forward.15} parent=1 // pred_check_branch
      %16 = sbr.rel (0) target = $region13
    $region12: #{bert_class_forward.15} parent=1 // pred_region
      _
    $region13: #{bert_class_forward.15} parent=1 // pred_fallthru
      _
    // Predicated region
    $region14: #{bert_class_forward.15} parent=1 // pred_check
      _
    $region15: #{bert_class_forward.15} parent=1 // pred_check_branch
      %18 = sbr.rel (0) target = $region17
    $region16: #{bert_class_forward.15} parent=1 // pred_region
      _
    $region17: #{bert_class_forward.15} parent=1 // pred_fallthru
      _
    // Predicated region
    $region18: #{bert_class_forward.15} parent=1 // pred_check
      _
    $region19: #{bert_class_forward.15} parent=1 // pred_check_branch
      %20 = sbr.rel (0) target = $region21
    $region20: #{bert_class_forward.15} parent=1 // pred_region
      _
    $region21: #{bert_class_forward.15} parent=1 // pred_fallthru
      _
    %v22 = vld [vmem:[%s0] sm:$0x1]
    %v23 = vld [vmem:[%s1] sm:$0xf]
    %v24 = vld [vmem:[%s1 + $0x4] sm:$0xf]
    %v25 = vld [vmem:[%s1 + $0x8] sm:$0xf]
    %v26 = vld [vmem:[%s1 + $0xc] sm:$0xf]
    %v27 = vld [vmem:[%s2] sm:$0x1]
    %v29 = vlaneseq
    %v30 = vshrl.u32 %v29, 7
    %v31 = vsub.s32 0, %v30
    %v32 = vrot.slane %v27, %v31
    %v38 = vunpack.c.l.b16 %v23
    %v39 = vunpack.c.l.b16 %v24
    %v40 = vunpack.c.l.b16 %v25
    %v41 = vunpack.c.l.b16 %v26
    %v42 = vpack.c.b16 %v39, %v38
    %v43 = vpack.c.b16 %v41, %v40
    %vm46 = vcmask 261120
    %v48 = vsel %vm46, %v22, 0
    %50 = vmatprep.subr.bf16.mxu0 0
    %51 = vmatpush1.bf16.msra.mxu0 0
    %52 = vmatprep.subr.bf16.mxu0 0
    %53 = vmatpush1.bf16.msra.mxu0 0
    %54 = vmatprep.subr.bf16.mxu0 0
    %55 = vmatpush1.bf16.msra.mxu0 0
    %56 = vmatprep.subr.bf16.mxu0 0
    %57 = vmatpush1.bf16.msra.mxu0 0
    %58 = vmatprep.subr.bf16.mxu0 0
    %59 = vmatpush1.bf16.msra.mxu0 0
    %60 = vmatprep.subr.bf16.mxu0 0
    %61 = vmatpush1.bf16.msra.mxu0 0
    %62 = vmatprep.subr.bf16.mxu0 0
    %63 = vmatpush1.bf16.msra.mxu0 %v43
    %64 = vmatprep.subr.bf16.mxu0 0
    %65 = vmatpush1.bf16.msra.mxu0 %v42
    %66 = vmatprep.subr.bf16.mxu0 0
    %67 = vmatpush2.bf16.msra.mxu0 0
    %68 = vmatprep.subr.bf16.mxu0 0
    %69 = vmatpush2.bf16.msra.mxu0 0
    %70 = vmatprep.subr.bf16.mxu0 0
    %71 = vmatpush2.bf16.msra.mxu0 0
    %72 = vmatprep.subr.bf16.mxu0 0
    %73 = vmatpush2.bf16.msra.mxu0 0
    %74 = vmatprep.subr.bf16.mxu0 0
    %75 = vmatpush2.bf16.msra.mxu0 0
    %76 = vmatprep.subr.bf16.mxu0 0
    %77 = vmatpush2.bf16.msra.mxu0 0
    %78 = vmatprep.subr.bf16.mxu0 0
    %79 = vmatpush2.bf16.msra.mxu0 0
    %80 = vmatprep.subr.bf16.mxu0 0
    %81 = vmatpush2.bf16.msra.mxu0 0
    %82 = vmatprep.mubr.bf16.mxu0 0
    %83 = vmatmul.mubr.bf16.gmra.mxu0 %v48
    %v84 = vpop.f32.mrf.mxu0
    %v85 = vadd.f32 %v32, %v84
    %v86 = vpop.f32.mrf.mxu0
    %v87 = vpop.f32.mrf.mxu0
    %v88 = vpop.f32.mrf.mxu0
    %89 = vdwg.mxu0
    %v90 = vtanh.pop %v85
    %v91 = vpack.c.bf16 %v90, %v90
    %v92 = vld [vmem:[%s3] sm:$0xf]
    %v93 = vld [vmem:[%s3 + $0x4] sm:$0xf]
    %v94 = vld [vmem:[%s3 + $0x8] sm:$0xf]
    %v95 = vld [vmem:[%s3 + $0xc] sm:$0xf]
    %v96 = vld [vmem:[%s4] sm:$0x1]
    %v98 = vlaneseq
    %v99 = vshrl.u32 %v98, 7
    %v100 = vsub.s32 0, %v99
    %v101 = vrot.slane %v96, %v100
    %v107 = vunpack.c.l.b16 %v92
    %v108 = vunpack.c.l.b16 %v93
    %v109 = vunpack.c.l.b16 %v94
    %v110 = vunpack.c.l.b16 %v95
    %v111 = vpack.c.b16 %v108, %v107
    %v112 = vpack.c.b16 %v110, %v109
    %v116 = vsel %vm46, %v91, 0
    %118 = vmatprep.subr.bf16.mxu0 0
    %119 = vmatpush1.bf16.msra.mxu0 0
    %120 = vmatprep.subr.bf16.mxu0 0
    %121 = vmatpush1.bf16.msra.mxu0 0
    %122 = vmatprep.subr.bf16.mxu0 0
    %123 = vmatpush1.bf16.msra.mxu0 0
    %124 = vmatprep.subr.bf16.mxu0 0
    %125 = vmatpush1.bf16.msra.mxu0 0
    %126 = vmatprep.subr.bf16.mxu0 0
    %127 = vmatpush1.bf16.msra.mxu0 0
    %128 = vmatprep.subr.bf16.mxu0 0
    %129 = vmatpush1.bf16.msra.mxu0 0
    %130 = vmatprep.subr.bf16.mxu0 0
    %131 = vmatpush1.bf16.msra.mxu0 %v112
    %132 = vmatprep.subr.bf16.mxu0 0
    %133 = vmatpush1.bf16.msra.mxu0 %v111
    %134 = vmatprep.subr.bf16.mxu0 0
    %135 = vmatpush2.bf16.msra.mxu0 0
    %136 = vmatprep.subr.bf16.mxu0 0
    %137 = vmatpush2.bf16.msra.mxu0 0
    %138 = vmatprep.subr.bf16.mxu0 0
    %139 = vmatpush2.bf16.msra.mxu0 0
    %140 = vmatprep.subr.bf16.mxu0 0
    %141 = vmatpush2.bf16.msra.mxu0 0
    %142 = vmatprep.subr.bf16.mxu0 0
    %143 = vmatpush2.bf16.msra.mxu0 0
    %144 = vmatprep.subr.bf16.mxu0 0
    %145 = vmatpush2.bf16.msra.mxu0 0
    %146 = vmatprep.subr.bf16.mxu0 0
    %147 = vmatpush2.bf16.msra.mxu0 0
    %148 = vmatprep.subr.bf16.mxu0 0
    %149 = vmatpush2.bf16.msra.mxu0 0
    %150 = vmatprep.mubr.bf16.mxu0 0
    %151 = vmatmul.mubr.bf16.gmra.mxu0 %v116
    %v152 = vpop.f32.mrf.mxu0
    %v153 = vadd.f32 %v101, %v152
    %v154 = vpop.f32.mrf.mxu0
    %v155 = vpop.f32.mrf.mxu0
    %v156 = vpop.f32.mrf.mxu0
    %157 = vdwg.mxu0
    %158 = vst [vmem:[#allocation2] sm:$0x3] %v153
    // Predicated region
    $region22: #{bert_class_forward.15} parent=1 // pred_check
      _
    $region23: #{bert_class_forward.15} parent=1 // pred_check_branch
      %160 = sbr.rel (0) target = $region25
    $region24: #{bert_class_forward.15} parent=1 // pred_region
      %s162 = ssub.s32 32, 32
      %163 = vsyncadd [#allocation3], %s162
      %s165 = sshll.u32 [#allocation2], 4
      %s166 = int_to_ptr.vmem [resolvable:$true] %s165
      %168 = dma.vmem_to_hbm [thread:$0]  %s166, 32, %s5, [#allocation3]
    $region25: #{bert_class_forward.15} parent=1 // pred_fallthru
      _
    // Predicated region
    $region26: #{bert_class_forward.15} parent=1 // pred_check
      _
    $region27: #{bert_class_forward.15} parent=1 // pred_check_branch
      %170 = sbr.rel (0) target = $region29
    $region28: #{bert_class_forward.15} parent=1 // pred_region
      %171 = dma.done [#allocation3], 32
    $region29: #{bert_class_forward.15} parent=1 // pred_fallthru
      _
    %172 = vsyncpa [#allocation3], 1

</llo_original>
